<compile_context>
chip_gen: v6e
topology: v6e:2x2x1
jax: 0.10.0
libtpu: 0.0.40
codegen_flags: <defaults>
</compile_context>

<pallas_src>
import jax
import jax.numpy as jnp
from jax import lax
from jax.experimental import pallas as pl
from jax.experimental.pallas import tpu as pltpu

LATENT_DIM = 64
_TB_CANDIDATES = (512, 256, 128)     # batch tiles, largest first
_SUBLANE = 16                        # bf16 min sublane tile -> batch pad granule
_VMEM_LIMIT_BYTES = 32 * 1024 * 1024 # explicit scoped-VMEM guard (v5e default is 16 MiB)


def _round_up(x, m):
    return ((x + m - 1) // m) * m


def _pad_to(mat, shape):
    return jnp.pad(mat, [(0, t - s) for s, t in zip(mat.shape, shape)])


def _deconv_as_matrix(W, bias, stride, pad, h_in, w_in):
    """Dense matrix exactly equivalent to nn.ConvTranspose2d.

    W    : (Cin, Cout, K, K)  -- PyTorch ConvTranspose2d weight layout
    bias : (Cout,)
    Returns M of shape (Cin*Hin*Win, Cout*Hout*Wout), flat bias
    (1, Cout*Hout*Wout), and (Hout, Wout).
    """
    c_in, c_out, K, _ = W.shape
    h_out = (h_in - 1) * stride - 2 * pad + K
    w_out = (w_in - 1) * stride - 2 * pad + K

    ih = jnp.arange(h_in)[:, None]
    oh = jnp.arange(h_out)[None, :]
    kh = oh - ih * stride + pad                       # (Hin, Hout)
    mh = (kh >= 0) & (kh < K)
    kh = jnp.clip(kh, 0, K - 1)

    iw = jnp.arange(w_in)[:, None]
    ow = jnp.arange(w_out)[None, :]
    kw = ow - iw * stride + pad                       # (Win, Wout)
    mw = (kw >= 0) & (kw < K)
    kw = jnp.clip(kw, 0, K - 1)

    # (Cin, Cout, Hin, Hout, K) -> (Cin, Cout, Hin, Hout, Win, Wout)
    Wg = W[:, :, kh, :][:, :, :, :, kw]
    Wg = Wg * mh[None, None, :, :, None, None].astype(W.dtype)
    Wg = Wg * mw[None, None, None, None, :, :].astype(W.dtype)
    # -> (Cin, Hin, Win, Cout, Hout, Wout), flatten both sides (NCHW order)
    M = jnp.transpose(Wg, (0, 2, 4, 1, 3, 5)).reshape(
        c_in * h_in * w_in, c_out * h_out * w_out)
    b_full = jnp.repeat(bias, h_out * w_out).reshape(1, c_out * h_out * w_out)
    return M, b_full, (h_out, w_out)


# --------------------------- Pallas kernel ---------------------------------
def _decoder_kernel(z_ref, w1_ref, b1_ref, w2_ref, b2_ref, w3_ref, b3_ref,
                    out_ref):
    # fused fc + deconv1 (bf16 MXU operands, f32 accumulation), ReLU in f32.
    x = jnp.dot(z_ref[...].astype(jnp.bfloat16), w1_ref[...],
                preferred_element_type=jnp.float32) + b1_ref[...]
    x = jnp.maximum(x, 0.0)
    # deconv2 + ReLU
    x = jnp.dot(x.astype(jnp.bfloat16), w2_ref[...],
                preferred_element_type=jnp.float32) + b2_ref[...]
    x = jnp.maximum(x, 0.0)
    # deconv3 + sigmoid as a single EUP push: sigmoid(x) = 0.5*tanh(0.5*x)+0.5
    x = jnp.dot(x.astype(jnp.bfloat16), w3_ref[...],
                preferred_element_type=jnp.float32) + b3_ref[...]
    # bf16 store halves the dominant HBM writeback stream.
    out_ref[...] = (0.5 * jnp.tanh(0.5 * x) + 0.5).astype(out_ref.dtype)


# --------------------------- parameter prep --------------------------------
def init_params(key, latent_dim=LATENT_DIM):
    ks = jax.random.split(key, 8)
    scale = 0.1
    return {
        # nn.Linear(latent_dim, 128): weight (128, latent), bias (128,)
        "fc_w": scale * jax.random.normal(ks[0], (8 * 4 * 4, latent_dim), jnp.float32),
        "fc_b": scale * jax.random.normal(ks[1], (8 * 4 * 4,), jnp.float32),
        # ConvTranspose2d weights are (Cin, Cout, K, K)
        "w1": scale * jax.random.normal(ks[2], (8, 4, 3, 3), jnp.float32),
        "b1": scale * jax.random.normal(ks[3], (4,), jnp.float32),
        "w2": scale * jax.random.normal(ks[4], (4, 2, 4, 4), jnp.float32),
        "b2": scale * jax.random.normal(ks[5], (2,), jnp.float32),
        "w3": scale * jax.random.normal(ks[6], (2, 1, 4, 4), jnp.float32),
        "b3": scale * jax.random.normal(ks[7], (1,), jnp.float32),
    }


def build_decoder_matrices(params, weight_dtype=jnp.bfloat16):
    """One-time prep (hoisted out of the per-call path): fused / padded mats."""
    latent = params["fc_w"].shape[1]
    wfc = params["fc_w"].T.astype(jnp.float32)               # (latent, 128)
    bfc = params["fc_b"].reshape(1, -1).astype(jnp.float32)  # (1, 128)

    m1, b1, (h1, w1s) = _deconv_as_matrix(params["w1"], params["b1"], 2, 1, 4, 4)
    m2, b2, (h2, w2s) = _deconv_as_matrix(params["w2"], params["b2"], 2, 1, h1, w1s)
    m3, b3, (h3, w3s) = _deconv_as_matrix(params["w3"], params["b3"], 2, 1, h2, w2s)

    # Fuse fc into deconv1 (no activation in between):
    #   deconv1(fc(z)) = z @ (wfc @ m1) + (bfc @ m1 + b1)
    w1f = wfc @ m1                      # (latent, 196)
    b1f = bfc @ m1 + b1                 # (1, 196)

    d1, d2, d3 = m1.shape[1], m2.shape[1], m3.shape[1]         # 196, 392, 784
    d1p, d2p, d3p = (_round_up(d, 128) for d in (d1, d2, d3))  # 256, 512, 896

    # Zero padding keeps the math exact: padded cols -> 0 pre-ReLU -> 0, and
    # padded rows of the next matrix are zero, so they contribute nothing.
    # (Padded cols of the *last* layer hold sigmoid(0)=0.5; sliced off below.)
    mats = {
        "w1": _pad_to(w1f, (latent, d1p)).astype(weight_dtype),
        "b1": _pad_to(b1f, (1, d1p)).astype(jnp.float32),
        "w2": _pad_to(m2, (d1p, d2p)).astype(weight_dtype),
        "b2": _pad_to(b2, (1, d2p)).astype(jnp.float32),
        "w3": _pad_to(m3, (d2p, d3p)).astype(weight_dtype),
        "b3": _pad_to(b3, (1, d3p)).astype(jnp.float32),
    }
    meta = {"out_dim": d3, "out_hw": (h3, w3s), "latent": latent}
    return mats, meta


# --------------------------- tiling choice ----------------------------------
def _choose_tiling(B):
    """Pick (tb, b_pad): minimal batch padding, >= 2 grid steps (v7x 2-TC),
    tb a multiple of 16 so the bf16 output sublane packing holds."""
    b_min = _round_up(max(B, 1), _SUBLANE)

    best_tb, best_pad, best_key = None, None, None
    for tb in _TB_CANDIDATES:
        b_pad = _round_up(b_min, tb)
        if b_pad // tb < 2:          # need >= 2 steps so both v7x TCs get work
            continue
        key = (b_pad - B, -tb)       # least padding, then largest tile
        if best_key is None or key < best_key:
            best_key, best_tb, best_pad = key, tb, b_pad
    if best_tb is not None:
        return best_tb, best_pad

    # Small batch: split into two sublane-aligned tiles.
    tb = _round_up(pl.cdiv(b_min, 2), _SUBLANE)
    return tb, 2 * tb


# --------------------------- forward wrapper -------------------------------
def _call_decoder(zp, mats, tb, b_pad, buffered_out):
    latent = zp.shape[1]
    d1p = mats["w1"].shape[1]
    d2p = mats["w2"].shape[1]
    d3p = mats["w3"].shape[1]

    out_spec_kwargs = {}
    if buffered_out:
        # 3-deep output buffering hides the HBM store under the next tile's
        # matmul chain (writeback-dominated kernel).
        out_spec_kwargs["pipeline_mode"] = pl.Buffered(3)

    return pl.pallas_call(
        _decoder_kernel,
        out_shape=jax.ShapeDtypeStruct((b_pad, d3p), jnp.bfloat16),
        grid=(b_pad // tb,),
        in_specs=[
            pl.BlockSpec((tb, latent), lambda i: (i, 0)),   # z tile (pipelined)
            pl.BlockSpec((latent, d1p), lambda i: (0, 0)),  # weights resident
            pl.BlockSpec((1, d1p), lambda i: (0, 0)),
            pl.BlockSpec((d1p, d2p), lambda i: (0, 0)),
            pl.BlockSpec((1, d2p), lambda i: (0, 0)),
            pl.BlockSpec((d2p, d3p), lambda i: (0, 0)),
            pl.BlockSpec((1, d3p), lambda i: (0, 0)),
        ],
        out_specs=pl.BlockSpec((tb, d3p), lambda i: (i, 0), **out_spec_kwargs),
        compiler_params=pltpu.CompilerParams(
            dimension_semantics=("parallel",),
            vmem_limit_bytes=_VMEM_LIMIT_BYTES),
    )(zp, mats["w1"], mats["b1"], mats["w2"], mats["b2"],
      mats["w3"], mats["b3"])


def decoder_forward(z, mats, meta):
    B, latent = z.shape
    tb, b_pad = _choose_tiling(B)
    zp = z if b_pad == B else jnp.pad(z, ((0, b_pad - B), (0, 0)))

    try:
        out = _call_decoder(zp, mats, tb, b_pad, buffered_out=True)
    except Exception:
        # Fall back to default double-buffered output if Buffered(3) on an
        # output spec is rejected by this Pallas/Mosaic version.
        out = _call_decoder(zp, mats, tb, b_pad, buffered_out=False)

    h, w = meta["out_hw"]
    # Slice padding off (padded cols hold 0.5, padded rows are garbage), then
    # cast back to f32 and reshape to NCHW like the PyTorch module.
    out = out[:B, :meta["out_dim"]].astype(jnp.float32)
    return out.reshape(B, 1, h, w)


# ---------------- pure-JAX reference (for correctness check) ----------------
def _ref_deconv(x, W, b, stride, pad):
    K = W.shape[2]
    # ConvTranspose2d == dilated conv with spatially-flipped, channel-swapped kernel
    w_conv = jnp.transpose(W[:, :, ::-1, ::-1], (1, 0, 2, 3))  # (Cout, Cin, K, K)
    y = lax.conv_general_dilated(
        x, w_conv, window_strides=(1, 1),
        padding=[(K - 1 - pad, K - 1 - pad)] * 2,
        lhs_dilation=(stride, stride),
        dimension_numbers=("NCHW", "OIHW", "NCHW"))
    return y + b[None, :, None, None]


def decoder_reference(z, params):
    x = z @ params["fc_w"].T + params["fc_b"]
    x = x.reshape(-1, 8, 4, 4)
    x = jax.nn.relu(_ref_deconv(x, params["w1"], params["b1"], 2, 1))
    x = jax.nn.relu(_ref_deconv(x, params["w2"], params["b2"], 2, 1))
    x = jax.nn.sigmoid(_ref_deconv(x, params["w3"], params["b3"], 2, 1))
    return x


if __name__ == "__main__":
    key = jax.random.PRNGKey(0)
    k_params, k_z = jax.random.split(key)
    params = init_params(k_params)

    # One-time (hoisted) construction of the fused/padded/bf16 matrices.
    mats, meta = build_decoder_matrices(params)
    mats = jax.block_until_ready(mats)

    B = 2
    z = jax.random.normal(k_z, (B, LATENT_DIM), dtype=jnp.float32)

    out = decoder_forward(z, mats, meta)
    out = jax.block_until_ready(out)

    assert out.shape == (B, 1, 28, 28), out.shape

    ref = jax.block_until_ready(decoder_reference(z, params))
    max_err = float(jnp.max(jnp.abs(out - ref)))
    # bf16 weights + bf16 output store: expect <~1e-2 absolute error on [0,1].
    assert max_err < 2e-2, f"max abs error {max_err}"

    print("KERNEL_OK")
</pallas_src>

<mosaic_0001>
module attributes {stable_mosaic.version = 11 : i64} {
  func.func @_decoder_kernel(%arg0: i32, %arg1: memref<16x64xf32, #tpu.memory_space<vmem>>, %arg2: memref<64x256xbf16, #tpu.memory_space<vmem>>, %arg3: memref<1x256xf32, #tpu.memory_space<vmem>>, %arg4: memref<256x512xbf16, #tpu.memory_space<vmem>>, %arg5: memref<1x512xf32, #tpu.memory_space<vmem>>, %arg6: memref<512x896xbf16, #tpu.memory_space<vmem>>, %arg7: memref<1x896xf32, #tpu.memory_space<vmem>>, %arg8: memref<16x896xbf16, #tpu.memory_space<vmem>>) attributes {dimension_semantics = [#tpu.dimension_semantics<parallel>], iteration_bounds = array<i64: 2>, scalar_prefetch = 0 : i64, scratch_operands = 0 : i64, tpu.core_type = #tpu.core_type<tc>, window_params = [{transform_indices = @transform_0, window_bounds = array<i64: 16, 64>}, {pipeline_mode = #tpu.pipeline_mode<synchronous>, transform_indices = @transform_1, window_bounds = array<i64: 64, 256>}, {pipeline_mode = #tpu.pipeline_mode<synchronous>, transform_indices = @transform_2, window_bounds = array<i64: 1, 256>}, {pipeline_mode = #tpu.pipeline_mode<synchronous>, transform_indices = @transform_3, window_bounds = array<i64: 256, 512>}, {pipeline_mode = #tpu.pipeline_mode<synchronous>, transform_indices = @transform_4, window_bounds = array<i64: 1, 512>}, {pipeline_mode = #tpu.pipeline_mode<synchronous>, transform_indices = @transform_5, window_bounds = array<i64: 512, 896>}, {pipeline_mode = #tpu.pipeline_mode<synchronous>, transform_indices = @transform_6, window_bounds = array<i64: 1, 896>}, {transform_indices = @transform_7, window_bounds = array<i64: 16, 896>}]} {
    %c0 = arith.constant 0 : index
    %c0_0 = arith.constant 0 : index
    %0 = vector.load %arg1[%c0, %c0_0] : memref<16x64xf32, #tpu.memory_space<vmem>>, vector<16x64xf32>
    %1 = arith.truncf %0 : vector<16x64xf32> to vector<16x64xbf16>
    %c0_1 = arith.constant 0 : index
    %c0_2 = arith.constant 0 : index
    %2 = vector.load %arg2[%c0_1, %c0_2] : memref<64x256xbf16, #tpu.memory_space<vmem>>, vector<64x256xbf16>
    %cst = arith.constant dense<0.000000e+00> : vector<16x256xf32>
    %3 = tpu.matmul %1, %2, %cst {dimension_numbers = #tpu.dot_dimension_numbers<[1], [0], [0], [1], [0, 0, 1, 1], [], []>} : vector<16x64xbf16>, vector<64x256xbf16>, vector<16x256xf32> -> vector<16x256xf32>
    %c0_3 = arith.constant 0 : index
    %c0_4 = arith.constant 0 : index
    %4 = vector.load %arg3[%c0_3, %c0_4] : memref<1x256xf32, #tpu.memory_space<vmem>>, vector<1x256xf32>
    %5 = vector.broadcast %4 : vector<1x256xf32> to vector<16x256xf32>
    %6 = arith.addf %3, %5 : vector<16x256xf32>
    %cst_5 = arith.constant 0.000000e+00 : f32
    %7 = vector.broadcast %cst_5 : f32 to vector<16x256xf32>
    %8 = arith.maximumf %6, %7 : vector<16x256xf32>
    %9 = arith.truncf %8 : vector<16x256xf32> to vector<16x256xbf16>
    %c0_6 = arith.constant 0 : index
    %c0_7 = arith.constant 0 : index
    %10 = vector.load %arg4[%c0_6, %c0_7] : memref<256x512xbf16, #tpu.memory_space<vmem>>, vector<256x512xbf16>
    %cst_8 = arith.constant dense<0.000000e+00> : vector<16x512xf32>
    %11 = tpu.matmul %9, %10, %cst_8 {dimension_numbers = #tpu.dot_dimension_numbers<[1], [0], [0], [1], [0, 0, 1, 1], [], []>} : vector<16x256xbf16>, vector<256x512xbf16>, vector<16x512xf32> -> vector<16x512xf32>
    %c0_9 = arith.constant 0 : index
    %c0_10 = arith.constant 0 : index
    %12 = vector.load %arg5[%c0_9, %c0_10] : memref<1x512xf32, #tpu.memory_space<vmem>>, vector<1x512xf32>
    %13 = vector.broadcast %12 : vector<1x512xf32> to vector<16x512xf32>
    %14 = arith.addf %11, %13 : vector<16x512xf32>
    %cst_11 = arith.constant 0.000000e+00 : f32
    %15 = vector.broadcast %cst_11 : f32 to vector<16x512xf32>
    %16 = arith.maximumf %14, %15 : vector<16x512xf32>
    %17 = arith.truncf %16 : vector<16x512xf32> to vector<16x512xbf16>
    %c0_12 = arith.constant 0 : index
    %c0_13 = arith.constant 0 : index
    %18 = vector.load %arg6[%c0_12, %c0_13] : memref<512x896xbf16, #tpu.memory_space<vmem>>, vector<512x896xbf16>
    %cst_14 = arith.constant dense<0.000000e+00> : vector<16x896xf32>
    %19 = tpu.matmul %17, %18, %cst_14 {dimension_numbers = #tpu.dot_dimension_numbers<[1], [0], [0], [1], [0, 0, 1, 1], [], []>} : vector<16x512xbf16>, vector<512x896xbf16>, vector<16x896xf32> -> vector<16x896xf32>
    %c0_15 = arith.constant 0 : index
    %c0_16 = arith.constant 0 : index
    %20 = vector.load %arg7[%c0_15, %c0_16] : memref<1x896xf32, #tpu.memory_space<vmem>>, vector<1x896xf32>
    %21 = vector.broadcast %20 : vector<1x896xf32> to vector<16x896xf32>
    %22 = arith.addf %19, %21 : vector<16x896xf32>
    %cst_17 = arith.constant 5.000000e-01 : f32
    %23 = vector.broadcast %cst_17 : f32 to vector<16x896xf32>
    %24 = arith.mulf %23, %22 : vector<16x896xf32>
    %25 = math.tanh %24 : vector<16x896xf32>
    %cst_18 = arith.constant 5.000000e-01 : f32
    %26 = vector.broadcast %cst_18 : f32 to vector<16x896xf32>
    %27 = arith.mulf %26, %25 : vector<16x896xf32>
    %cst_19 = arith.constant 5.000000e-01 : f32
    %28 = vector.broadcast %cst_19 : f32 to vector<16x896xf32>
    %29 = arith.addf %27, %28 : vector<16x896xf32>
    %30 = arith.truncf %29 : vector<16x896xf32> to vector<16x896xbf16>
    %c0_20 = arith.constant 0 : index
    %c0_21 = arith.constant 0 : index
    %31 = vector.load %arg8[%c0_20, %c0_21] : memref<16x896xbf16, #tpu.memory_space<vmem>>, vector<16x896xbf16>
    tpu.vector_store %arg8[%c0_20, %c0_21], %30 {strides = array<i32>} : memref<16x896xbf16, #tpu.memory_space<vmem>>, vector<16x896xbf16>,
    return
  }
  func.func @transform_0(%arg0: i32) -> (i32, i32) {
    %c0_i32 = arith.constant 0 : i32
    %c0_i32_0 = arith.constant 0 : i32
    return %arg0, %c0_i32 : i32, i32
  }
  func.func @transform_1(%arg0: i32) -> (i32, i32) {
    %c0_i32 = arith.constant 0 : i32
    %c0_i32_0 = arith.constant 0 : i32
    %c0_i32_1 = arith.constant 0 : i32
    return %c0_i32, %c0_i32_0 : i32, i32
  }
  func.func @transform_2(%arg0: i32) -> (i32, i32) {
    %c0_i32 = arith.constant 0 : i32
    %c0_i32_0 = arith.constant 0 : i32
    %c0_i32_1 = arith.constant 0 : i32
    return %c0_i32, %c0_i32_0 : i32, i32
  }
  func.func @transform_3(%arg0: i32) -> (i32, i32) {
    %c0_i32 = arith.constant 0 : i32
    %c0_i32_0 = arith.constant 0 : i32
    %c0_i32_1 = arith.constant 0 : i32
    return %c0_i32, %c0_i32_0 : i32, i32
  }
  func.func @transform_4(%arg0: i32) -> (i32, i32) {
    %c0_i32 = arith.constant 0 : i32
    %c0_i32_0 = arith.constant 0 : i32
    %c0_i32_1 = arith.constant 0 : i32
    return %c0_i32, %c0_i32_0 : i32, i32
  }
  func.func @transform_5(%arg0: i32) -> (i32, i32) {
    %c0_i32 = arith.constant 0 : i32
    %c0_i32_0 = arith.constant 0 : i32
    %c0_i32_1 = arith.constant 0 : i32
    return %c0_i32, %c0_i32_0 : i32, i32
  }
  func.func @transform_6(%arg0: i32) -> (i32, i32) {
    %c0_i32 = arith.constant 0 : i32
    %c0_i32_0 = arith.constant 0 : i32
    %c0_i32_1 = arith.constant 0 : i32
    return %c0_i32, %c0_i32_0 : i32, i32
  }
  func.func @transform_7(%arg0: i32) -> (i32, i32) {
    %c0_i32 = arith.constant 0 : i32
    %c0_i32_0 = arith.constant 0 : i32
    return %arg0, %c0_i32 : i32, i32
  }
}

</mosaic_0001>

<llo_original>
// kernel: tpu_custom_call.1
$region0: #{tpu_custom_call.1}
  #allocation0 [shape = 'u32[]', space=smem, size = 0x4, offset = 0x4, fixed_abs, tag = 'smem constant byte address 0x4 - core index']
  #allocation1 [shape = 'u32[144,128]{1,0:T(1,128)}', space=vmem, size = 0x12000, scoped, tag = 'internal scratch']
  %s0 = inlined_call_operand.hbm [shape: f32[32,64], index: 0, kind: input, shape index: {}]
  %s1 = inlined_call_operand.hbm [shape: bf16[64,256], index: 1, kind: input, shape index: {}]
  %s2 = inlined_call_operand.vmem [shape: f32[1,256], index: 2, kind: input, shape index: {}]
  %s3 = inlined_call_operand.hbm [shape: bf16[256,512], index: 3, kind: input, shape index: {}]
  %s4 = inlined_call_operand.hbm [shape: f32[1,512], index: 4, kind: input, shape index: {}]
  %s5 = inlined_call_operand.hbm [shape: bf16[512,896], index: 5, kind: input, shape index: {}]
  %s6 = inlined_call_operand.vmem [shape: f32[1,896], index: 6, kind: input, shape index: {}]
  %s7 = inlined_call_operand.hbm [shape: bf16[32,896], index: 7, kind: output, shape index: {}]
  %s8 = sld [smem:[#allocation0]]
  $region81: #{tpu_custom_call.1} parent=0
    _
  %s10 = ssub.s32 1, %s8
  %s11 = scalar_select 0, %s10, %s8
  $region1: #{tpu_custom_call.1} parent=0
    #allocation2 [shape = 'u8[16384]{0}', space=vmem, size = 0x4000, scoped, tag = 'input window, operand 0']
    #allocation3 [shape = 's32[2]{0}', space=sflag, size = 0x8, scoped, tag = 'scoped memory for tpu_custom_call.1']
    #allocation4 [shape = 's32[2]{0}', space=sflag, size = 0x8, scoped, tag = 'scoped memory for tpu_custom_call.1']
    #allocation5 [shape = 'u8[32768]{0}', space=vmem, size = 0x8000, scoped, tag = 'input window, operand 1, single buffered']
    #allocation6 [shape = 's32[1]{0}', space=sflag, size = 0x4, scoped, tag = 'scoped memory for tpu_custom_call.1']
    #allocation7 [shape = 'u8[262144]{0}', space=vmem, size = 0x40000, scoped, tag = 'input window, operand 3, single buffered']
    #allocation8 [shape = 'u8[2048]{0}', space=vmem, size = 0x800, scoped, tag = 'input window, operand 4, single buffered']
    #allocation9 [shape = 's32[1]{0}', space=sflag, size = 0x4, scoped, tag = 'scoped memory for tpu_custom_call.1']
    #allocation10 [shape = 'u8[917504]{0}', space=vmem, size = 0xe0000, scoped, tag = 'input window, operand 5, single buffered']
    #allocation11 [shape = 'u8[57344]{0}', space=vmem, size = 0xe000, scoped, tag = 'output window, operand 0']
    %12 = vsyncpa [#allocation3], 0
    %s13 = scalar_lea.sflag [#allocation3], 1
    %14 = vsyncpa %s13, 0
    %15 = vsyncpa [#allocation6], 0
    %16 = vsyncpa [#allocation9], 0
    %17 = vsyncpa [#allocation4], 0
    %s18 = scalar_lea.sflag [#allocation4], 1
    %19 = vsyncpa %s18, 0
    loop: start=0, step=1, limit=4
    $region2: #{tpu_custom_call.1} parent=1 // loop_pre_header
      _
    $region3: #{tpu_custom_call.1} parent=1 // loop_header
      %s21 = sphi 0, %s25
      %p22 = scmp.ge.s32.totalorder %s21, 4
      %s31 = sphi 0, %s33
      %s34 = sphi 0, %s31
      %s35 = sphi 0, %s34
      %s51 = sphi 0, %s35
      %s55 = sphi 0, %s55
      %s57 = sphi 0, %s55
      %s58 = sphi 0, %s57
      %s72 = sphi 0, %s58
      %s76 = sphi 0, %s76
      %s78 = sphi 0, %s76
      %s79 = sphi 0, %s78
      %s93 = sphi 0, %s79
      %s97 = sphi 0, %s97
      %s99 = sphi 0, %s97
      %s100 = sphi 0, %s99
      %s114 = sphi 0, %s100
      %s118 = sphi 0, %s118
      %s120 = sphi 0, %s118
      %s121 = sphi 0, %s120
      %s135 = sphi 0, %s121
      %s139 = sphi 0, %s139
      %s141 = sphi 0, %s139
      %s142 = sphi 0, %s141
      %s156 = sphi 0, %s142
      %s160 = sphi 0, %s160
      %s162 = sphi 0, %s160
      %s163 = sphi 0, %s162
      %s177 = sphi 0, %s163
      %s183 = sphi 0, %s185
      %s186 = sphi 0, %s183
      %s187 = sphi 0, %s186
      %s203 = sphi 0, %s187
    $region4: #{tpu_custom_call.1} parent=1 // loop_header_branch
      %24 = sbr.rel (%p22) target = $region8
    $region5: #{tpu_custom_call.1} parent=1 // loop_body
      %s26 = ssub.s32 %s21, 1
      %s27 = ssub.s32 %s21, 2
      %s28 = sadd.s32 %s21, 1
      %s29 = ssub.s32 %s21, %s28
      %p30 = scmp.eq.s32.totalorder %s29, 0
      %s32 = sadd.s32 %s31, 1
      %s33 = scalar_select %p30, %s31, %s32
      %p36 = pneg %p30
      %p37 = scmp.eq.s32.totalorder %s21, 1
      %p38 = por %p36, %p37
      %p39 = scmp.ne.s32.totalorder %s31, %s34
      %p40 = scmp.eq.s32.totalorder %s21, 0
      %p41 = por %p39, %p40
      %p42 = scmp.ne.s32.totalorder %s31, %s34
      %p43 = scmp.eq.s32.totalorder %s26, 1
      %p44 = por %p42, %p43
      %p45 = scmp.ne.s32.totalorder %s34, %s35
      %p46 = scmp.eq.s32.totalorder %s26, 0
      %p47 = por %p45, %p46
      %p48 = scmp.ne.s32.totalorder %s34, %s35
      %p49 = scmp.eq.s32.totalorder %s27, 1
      %p50 = por %p48, %p49
      %p52 = scmp.ne.s32.totalorder %s35, %s51
      %p53 = scmp.eq.s32.totalorder %s27, 0
      %p54 = por %p52, %p53
      %s56 = sadd.s32 %s55, 1
      %p59 = scmp.eq.s32.totalorder %s21, 1
      %p60 = scmp.ne.s32.totalorder %s55, %s57
      %p61 = scmp.eq.s32.totalorder %s21, 0
      %p62 = por %p60, %p61
      %p63 = scmp.ne.s32.totalorder %s55, %s57
      %p64 = scmp.eq.s32.totalorder %s26, 1
      %p65 = por %p63, %p64
      %p66 = scmp.ne.s32.totalorder %s57, %s58
      %p67 = scmp.eq.s32.totalorder %s26, 0
      %p68 = por %p66, %p67
      %p69 = scmp.ne.s32.totalorder %s57, %s58
      %p70 = scmp.eq.s32.totalorder %s27, 1
      %p71 = por %p69, %p70
      %p73 = scmp.ne.s32.totalorder %s58, %s72
      %p74 = scmp.eq.s32.totalorder %s27, 0
      %p75 = por %p73, %p74
      %s77 = sadd.s32 %s76, 1
      %p80 = scmp.eq.s32.totalorder %s21, 1
      %p81 = scmp.ne.s32.totalorder %s76, %s78
      %p82 = scmp.eq.s32.totalorder %s21, 0
      %p83 = por %p81, %p82
      %p84 = scmp.ne.s32.totalorder %s76, %s78
      %p85 = scmp.eq.s32.totalorder %s26, 1
      %p86 = por %p84, %p85
      %p87 = scmp.ne.s32.totalorder %s78, %s79
      %p88 = scmp.eq.s32.totalorder %s26, 0
      %p89 = por %p87, %p88
      %p90 = scmp.ne.s32.totalorder %s78, %s79
      %p91 = scmp.eq.s32.totalorder %s27, 1
      %p92 = por %p90, %p91
      %p94 = scmp.ne.s32.totalorder %s79, %s93
      %p95 = scmp.eq.s32.totalorder %s27, 0
      %p96 = por %p94, %p95
      %s98 = sadd.s32 %s97, 1
      %p101 = scmp.eq.s32.totalorder %s21, 1
      %p102 = scmp.ne.s32.totalorder %s97, %s99
      %p103 = scmp.eq.s32.totalorder %s21, 0
      %p104 = por %p102, %p103
      %p105 = scmp.ne.s32.totalorder %s97, %s99
      %p106 = scmp.eq.s32.totalorder %s26, 1
      %p107 = por %p105, %p106
      %p108 = scmp.ne.s32.totalorder %s99, %s100
      %p109 = scmp.eq.s32.totalorder %s26, 0
      %p110 = por %p108, %p109
      %p111 = scmp.ne.s32.totalorder %s99, %s100
      %p112 = scmp.eq.s32.totalorder %s27, 1
      %p113 = por %p111, %p112
      %p115 = scmp.ne.s32.totalorder %s100, %s114
      %p116 = scmp.eq.s32.totalorder %s27, 0
      %p117 = por %p115, %p116
      %s119 = sadd.s32 %s118, 1
      %p122 = scmp.eq.s32.totalorder %s21, 1
      %p123 = scmp.ne.s32.totalorder %s118, %s120
      %p124 = scmp.eq.s32.totalorder %s21, 0
      %p125 = por %p123, %p124
      %p126 = scmp.ne.s32.totalorder %s118, %s120
      %p127 = scmp.eq.s32.totalorder %s26, 1
      %p128 = por %p126, %p127
      %p129 = scmp.ne.s32.totalorder %s120, %s121
      %p130 = scmp.eq.s32.totalorder %s26, 0
      %p131 = por %p129, %p130
      %p132 = scmp.ne.s32.totalorder %s120, %s121
      %p133 = scmp.eq.s32.totalorder %s27, 1
      %p134 = por %p132, %p133
      %p136 = scmp.ne.s32.totalorder %s121, %s135
      %p137 = scmp.eq.s32.totalorder %s27, 0
      %p138 = por %p136, %p137
      %s140 = sadd.s32 %s139, 1
      %p143 = scmp.eq.s32.totalorder %s21, 1
      %p144 = scmp.ne.s32.totalorder %s139, %s141
      %p145 = scmp.eq.s32.totalorder %s21, 0
      %p146 = por %p144, %p145
      %p147 = scmp.ne.s32.totalorder %s139, %s141
      %p148 = scmp.eq.s32.totalorder %s26, 1
      %p149 = por %p147, %p148
      %p150 = scmp.ne.s32.totalorder %s141, %s142
      %p151 = scmp.eq.s32.totalorder %s26, 0
      %p152 = por %p150, %p151
      %p153 = scmp.ne.s32.totalorder %s141, %s142
      %p154 = scmp.eq.s32.totalorder %s27, 1
      %p155 = por %p153, %p154
      %p157 = scmp.ne.s32.totalorder %s142, %s156
      %p158 = scmp.eq.s32.totalorder %s27, 0
      %p159 = por %p157, %p158
      %s161 = sadd.s32 %s160, 1
      %p164 = scmp.eq.s32.totalorder %s21, 1
      %p165 = scmp.ne.s32.totalorder %s160, %s162
      %p166 = scmp.eq.s32.totalorder %s21, 0
      %p167 = por %p165, %p166
      %p168 = scmp.ne.s32.totalorder %s160, %s162
      %p169 = scmp.eq.s32.totalorder %s26, 1
      %p170 = por %p168, %p169
      %p171 = scmp.ne.s32.totalorder %s162, %s163
      %p172 = scmp.eq.s32.totalorder %s26, 0
      %p173 = por %p171, %p172
      %p174 = scmp.ne.s32.totalorder %s162, %s163
      %p175 = scmp.eq.s32.totalorder %s27, 1
      %p176 = por %p174, %p175
      %p178 = scmp.ne.s32.totalorder %s163, %s177
      %p179 = scmp.eq.s32.totalorder %s27, 0
      %p180 = por %p178, %p179
      %s181 = ssub.s32 %s21, %s28
      %p182 = scmp.eq.s32.totalorder %s181, 0
      %s184 = sadd.s32 %s183, 1
      %s185 = scalar_select %p182, %s183, %s184
      %p188 = pneg %p182
      %p189 = scmp.eq.s32.totalorder %s21, 1
      %p190 = por %p188, %p189
      %p191 = scmp.ne.s32.totalorder %s183, %s186
      %p192 = scmp.eq.s32.totalorder %s21, 0
      %p193 = por %p191, %p192
      %p194 = scmp.ne.s32.totalorder %s183, %s186
      %p195 = scmp.eq.s32.totalorder %s26, 1
      %p196 = por %p194, %p195
      %p197 = scmp.ne.s32.totalorder %s186, %s187
      %p198 = scmp.eq.s32.totalorder %s26, 0
      %p199 = por %p197, %p198
      %p200 = scmp.ne.s32.totalorder %s186, %s187
      %p201 = scmp.eq.s32.totalorder %s27, 1
      %p202 = por %p200, %p201
      %p204 = scmp.ne.s32.totalorder %s187, %s203
      %p205 = scmp.eq.s32.totalorder %s27, 0
      %p206 = por %p204, %p205
      %p207 = scmp.le.s32.totalorder 1, %s21
      %p208 = scmp.lt.s32.totalorder %s21, 3
      %p209 = pnand %p207, %p208
      %p210 = pneg %p209
      // Predicated region
      $region9: #{tpu_custom_call.1} parent=5 // pred_check
        _
      $region10: #{tpu_custom_call.1} parent=5 // pred_check_branch
        %212 = sbr.rel (%p209) target = $region12
      $region11: #{tpu_custom_call.1} parent=5 // pred_region
        %s213 = ssub.s32 %s21, 1
        // Predicated region
        $region13: #{tpu_custom_call.1} parent=11 // pred_check
          %p214 = pneg %p68
        $region14: #{tpu_custom_call.1} parent=11 // pred_check_branch
          %216 = sbr.rel (%p214) target = $region16
        $region15: #{tpu_custom_call.1} parent=11 // pred_region
          %s218 = ssub.s32 1024, 1024
          %219 = vsyncadd [#allocation6], %s218
          %s220 = sshll.u32 [#allocation5], 4
          %s221 = int_to_ptr.vmem [resolvable:$true] %s220
          %226 = dma.hbm_to_vmem [thread:$0]  %s1, 1024, %s221, [#allocation6], 128, 128, 8
        $region16: #{tpu_custom_call.1} parent=11 // pred_fallthru
          _
        // Predicated region
        $region17: #{tpu_custom_call.1} parent=11 // pred_check
          %p227 = pneg %p89
        $region18: #{tpu_custom_call.1} parent=11 // pred_check_branch
          %229 = sbr.rel (%p227) target = $region20
        $region19: #{tpu_custom_call.1} parent=11 // pred_region
          _
        $region20: #{tpu_custom_call.1} parent=11 // pred_fallthru
          _
        // Predicated region
        $region21: #{tpu_custom_call.1} parent=11 // pred_check
          %p230 = pneg %p110
        $region22: #{tpu_custom_call.1} parent=11 // pred_check_branch
          %232 = sbr.rel (%p230) target = $region24
        $region23: #{tpu_custom_call.1} parent=11 // pred_region
          %s234 = ssub.s32 8192, 8192
          %235 = vsyncadd [#allocation6], %s234
          %s236 = sshll.u32 [#allocation7], 4
          %s237 = int_to_ptr.vmem [resolvable:$true] %s236
          %242 = dma.hbm_to_vmem [thread:$0]  %s3, 8192, %s237, [#allocation6], 256, 256, 16
        $region24: #{tpu_custom_call.1} parent=11 // pred_fallthru
          _
        // Predicated region
        $region25: #{tpu_custom_call.1} parent=11 // pred_check
          %p243 = pneg %p131
        $region26: #{tpu_custom_call.1} parent=11 // pred_check_branch
          %245 = sbr.rel (%p243) target = $region28
        $region27: #{tpu_custom_call.1} parent=11 // pred_region
          %s247 = ssub.s32 64, 64
          %248 = vsyncadd [#allocation9], %s247
          %s250 = sshll.u32 [#allocation8], 4
          %s251 = int_to_ptr.vmem [resolvable:$true] %s250
          %253 = dma.hbm_to_vmem [thread:$0]  %s4, 64, %s251, [#allocation9]
        $region28: #{tpu_custom_call.1} parent=11 // pred_fallthru
          _
        // Predicated region
        $region29: #{tpu_custom_call.1} parent=11 // pred_check
          %p254 = pneg %p152
        $region30: #{tpu_custom_call.1} parent=11 // pred_check_branch
          %256 = sbr.rel (%p254) target = $region32
        $region31: #{tpu_custom_call.1} parent=11 // pred_region
          %s258 = ssub.s32 28672, 28672
          %259 = vsyncadd [#allocation9], %s258
          %s260 = sshll.u32 [#allocation10], 4
          %s261 = int_to_ptr.vmem [resolvable:$true] %s260
          %266 = dma.hbm_to_vmem [thread:$0]  %s5, 28672, %s261, [#allocation9], 448, 448, 28
        $region32: #{tpu_custom_call.1} parent=11 // pred_fallthru
          _
        // Predicated region
        $region33: #{tpu_custom_call.1} parent=11 // pred_check
          %p267 = pneg %p173
        $region34: #{tpu_custom_call.1} parent=11 // pred_check_branch
          %269 = sbr.rel (%p267) target = $region36
        $region35: #{tpu_custom_call.1} parent=11 // pred_region
          _
        $region36: #{tpu_custom_call.1} parent=11 // pred_fallthru
          _
      $region12: #{tpu_custom_call.1} parent=5 // pred_fallthru
        _
      %p270 = scmp.lt.s32.totalorder %s21, 2
      // Predicated region
      $region37: #{tpu_custom_call.1} parent=5 // pred_check
        %p271 = pneg %p270
      $region38: #{tpu_custom_call.1} parent=5 // pred_check_branch
        %273 = sbr.rel (%p271) target = $region40
      $region39: #{tpu_custom_call.1} parent=5 // pred_region
        // Predicated region
        $region41: #{tpu_custom_call.1} parent=39 // pred_check
          %p274 = pneg %p41
        $region42: #{tpu_custom_call.1} parent=39 // pred_check_branch
          %276 = sbr.rel (%p274) target = $region44
        $region43: #{tpu_custom_call.1} parent=39 // pred_region
          %s277 = sand.u32 %s31, 1
          %s278 = scalar_lea.sflag [#allocation3], %s277
          %s279 = sand.u32 %s31, 1
          %s280 = smul.addr %s279, 16
          %s281 = scalar_lea.vmem [#allocation2], %s280
          %s282 = smul.u32 2, %s21
          %s284 = ssub.s32 256, 256
          %285 = vsyncadd %s278, %s284
          %s286 = smul.addr %s282, 128
          %s287 = scalar_lea.hbm %s0, %s286
          %s288 = sshll.u32 %s281, 4
          %s289 = int_to_ptr.vmem [resolvable:$true] %s288
          %294 = dma.hbm_to_vmem [thread:$0]  %s287, 256, %s289, %s278, 128, 128, 8
        $region44: #{tpu_custom_call.1} parent=39 // pred_fallthru
          _
      $region40: #{tpu_custom_call.1} parent=5 // pred_fallthru
        _
      %p295 = scmp.le.s32.totalorder 1, %s21
      %p296 = scmp.lt.s32.totalorder %s21, 3
      %p297 = pnand %p295, %p296
      %p298 = pneg %p297
      // Predicated region
      $region45: #{tpu_custom_call.1} parent=5 // pred_check
        _
      $region46: #{tpu_custom_call.1} parent=5 // pred_check_branch
        %300 = sbr.rel (%p297) target = $region48
      $region47: #{tpu_custom_call.1} parent=5 // pred_region
        %s301 = ssub.s32 %s21, 1
        %s302 = sand.u32 %s34, 1
        %s303 = scalar_lea.sflag [#allocation3], %s302
        %s304 = sand.u32 %s34, 1
        %s305 = smul.addr %s304, 16
        %s306 = scalar_lea.vmem [#allocation2], %s305
        // Predicated region
        $region49: #{tpu_custom_call.1} parent=47 // pred_check
          %p307 = pneg %p47
        $region50: #{tpu_custom_call.1} parent=47 // pred_check_branch
          %309 = sbr.rel (%p307) target = $region52
        $region51: #{tpu_custom_call.1} parent=47 // pred_region
          %310 = dma.done %s303, 256
        $region52: #{tpu_custom_call.1} parent=47 // pred_fallthru
          _
        // Predicated region
        $region53: #{tpu_custom_call.1} parent=47 // pred_check
          %p311 = pneg %p68
        $region54: #{tpu_custom_call.1} parent=47 // pred_check_branch
          %313 = sbr.rel (%p311) target = $region56
        $region55: #{tpu_custom_call.1} parent=47 // pred_region
          %314 = dma.done [#allocation6], 1024
        $region56: #{tpu_custom_call.1} parent=47 // pred_fallthru
          _
        // Predicated region
        $region57: #{tpu_custom_call.1} parent=47 // pred_check
          %p315 = pneg %p110
        $region58: #{tpu_custom_call.1} parent=47 // pred_check_branch
          %317 = sbr.rel (%p315) target = $region60
        $region59: #{tpu_custom_call.1} parent=47 // pred_region
          %318 = dma.done [#allocation6], 8192
        $region60: #{tpu_custom_call.1} parent=47 // pred_fallthru
          _
        // Predicated region
        $region61: #{tpu_custom_call.1} parent=47 // pred_check
          %p319 = pneg %p131
        $region62: #{tpu_custom_call.1} parent=47 // pred_check_branch
          %321 = sbr.rel (%p319) target = $region64
        $region63: #{tpu_custom_call.1} parent=47 // pred_region
          %322 = dma.done [#allocation9], 64
        $region64: #{tpu_custom_call.1} parent=47 // pred_fallthru
          _
        // Predicated region
        $region65: #{tpu_custom_call.1} parent=47 // pred_check
          %p323 = pneg %p152
        $region66: #{tpu_custom_call.1} parent=47 // pred_check_branch
          %325 = sbr.rel (%p323) target = $region68
        $region67: #{tpu_custom_call.1} parent=47 // pred_region
          %326 = dma.done [#allocation9], 28672
        $region68: #{tpu_custom_call.1} parent=47 // pred_fallthru
          _
        %s327 = sand.u32 %s34, 1
        %s328 = scalar_lea.sflag [#allocation3], %s327
        %s329 = sand.u32 %s34, 1
        %s330 = smul.addr %s329, 16
        %s331 = scalar_lea.vmem [#allocation2], %s330
        %p332 = pneg %p47
        %p333 = pneg %p44
        %p334 = pneg %p68
        %p335 = pneg %p65
        %p336 = pneg %p89
        %p337 = pneg %p86
        %p338 = pneg %p110
        %p339 = pneg %p107
        %p340 = pneg %p131
        %p341 = pneg %p128
        %p342 = pneg %p152
        %p343 = pneg %p149
        %p344 = pneg %p173
        %p345 = pneg %p170
        %p346 = pneg %p199
        %p347 = pneg %p196
        %s348 = sand.u32 %s186, 1
        %s349 = scalar_lea.sflag [#allocation4], %s348
        %s350 = sand.u32 %s186, 1
        %s351 = smul.addr %s350, 56
        %s352 = scalar_lea.vmem [#allocation11], %s351
        %s353 = smul.u32 2, %s26
        %s354 = smul.u32 2, %s26
        %v356 = vld [vmem:[%s306] sm:$0xff]
        %v357 = vld [vmem:[%s306 + $0x8] sm:$0xff]
        %v358 = vpack.c.bf16 %v357, %v356
        %v359 = vld [vmem:[#allocation5] sm:$0xff]
        %v360 = vld [vmem:[#allocation5 + $0x8] sm:$0xff]
        %v361 = vld [vmem:[#allocation5 + $0x10] sm:$0xff]
        %v362 = vld [vmem:[#allocation5 + $0x18] sm:$0xff]
        %v363 = vld [vmem:[#allocation5 + $0x20] sm:$0xff]
        %v364 = vld [vmem:[#allocation5 + $0x28] sm:$0xff]
        %v365 = vld [vmem:[#allocation5 + $0x30] sm:$0xff]
        %v366 = vld [vmem:[#allocation5 + $0x38] sm:$0xff]
        %v367 = vld [vmem:[%s2] sm:$0x3]
        %v369 = vlaneseq
        %v370 = vshrl.u32 %v369, 7
        %v371 = vsub.s32 0, %v370
        %v372 = vrot.slane %v367, %v371
        %v373 = vlaneseq
        %v374 = vshrl.u32 %v373, 7
        %v375 = vsub.s32 1, %v374
        %v376 = vrot.slane %v367, %v375
        %v387 = vunpack.c.l.b16 %v359
        %v388 = vunpack.c.h.b16 %v359
        %v389 = vunpack.c.l.b16 %v360
        %v390 = vunpack.c.h.b16 %v360
        %v391 = vunpack.c.l.b16 %v361
        %v392 = vunpack.c.h.b16 %v361
        %v393 = vunpack.c.l.b16 %v362
        %v394 = vunpack.c.h.b16 %v362
        %v395 = vunpack.c.l.b16 %v363
        %v396 = vunpack.c.h.b16 %v363
        %v397 = vunpack.c.l.b16 %v364
        %v398 = vunpack.c.h.b16 %v364
        %v399 = vunpack.c.l.b16 %v365
        %v400 = vunpack.c.h.b16 %v365
        %v401 = vunpack.c.l.b16 %v366
        %v402 = vunpack.c.h.b16 %v366
        %v403 = vpack.c.b16 %v389, %v387
        %v404 = vpack.c.b16 %v390, %v388
        %v405 = vpack.c.b16 %v393, %v391
        %v406 = vpack.c.b16 %v394, %v392
        %v407 = vpack.c.b16 %v397, %v395
        %v408 = vpack.c.b16 %v398, %v396
        %v409 = vpack.c.b16 %v401, %v399
        %v410 = vpack.c.b16 %v402, %v400
        %vm419 = vcmask 523264
        %v421 = vsel %vm419, %v358, 0
        %423 = vmatprep.subr.bf16.mxu0 0
        %424 = vmatpush1.bf16.msra.mxu0 0
        %425 = vmatprep.subr.bf16.mxu0 0
        %426 = vmatpush1.bf16.msra.mxu0 0
        %427 = vmatprep.subr.bf16.mxu0 0
        %428 = vmatpush1.bf16.msra.mxu0 0
        %429 = vmatprep.subr.bf16.mxu0 0
        %430 = vmatpush1.bf16.msra.mxu0 0
        %431 = vmatprep.subr.bf16.mxu0 %v410
        %432 = vmatpush1.bf16.msra.mxu0 %v409
        %433 = vmatprep.subr.bf16.mxu0 %v408
        %434 = vmatpush1.bf16.msra.mxu0 %v407
        %435 = vmatprep.subr.bf16.mxu0 %v406
        %436 = vmatpush1.bf16.msra.mxu0 %v405
        %437 = vmatprep.subr.bf16.mxu0 %v404
        %438 = vmatpush1.bf16.msra.mxu0 %v403
        %439 = vmatprep.subr.bf16.mxu0 0
        %440 = vmatpush2.bf16.msra.mxu0 0
        %441 = vmatprep.subr.bf16.mxu0 0
        %442 = vmatpush2.bf16.msra.mxu0 0
        %443 = vmatprep.subr.bf16.mxu0 0
        %444 = vmatpush2.bf16.msra.mxu0 0
        %445 = vmatprep.subr.bf16.mxu0 0
        %446 = vmatpush2.bf16.msra.mxu0 0
        %447 = vmatprep.subr.bf16.mxu0 0
        %448 = vmatpush2.bf16.msra.mxu0 0
        %449 = vmatprep.subr.bf16.mxu0 0
        %450 = vmatpush2.bf16.msra.mxu0 0
        %451 = vmatprep.subr.bf16.mxu0 0
        %452 = vmatpush2.bf16.msra.mxu0 0
        %453 = vmatprep.subr.bf16.mxu0 0
        %454 = vmatpush2.bf16.msra.mxu0 0
        %455 = vmatprep.mubr.bf16.mxu0 0
        %456 = vmatmul.mubr.bf16.gmra.mxu0 %v421
        %v457 = vpop.f32.mrf.mxu0
        %v458 = vadd.f32 %v372, %v457
        %v459 = vpop.f32.mrf.mxu0
        %v460 = vadd.f32 %v376, %v459
        %v461 = vpop.f32.mrf.mxu0
        %v462 = vadd.f32 %v372, %v461
        %v463 = vpop.f32.mrf.mxu0
        %v464 = vadd.f32 %v376, %v463
        %465 = vdwg.mxu0
        %v466 = vmax.f32 %v458, 0.0
        %v467 = vmax.f32 %v460, 0.0
        %v468 = vmax.f32 %v462, 0.0
        %v469 = vmax.f32 %v464, 0.0
        %v470 = vpack.c.bf16 %v468, %v466
        %v471 = vpack.c.bf16 %v469, %v467
        %v472 = vld [vmem:[#allocation7] sm:$0xff]
        %v473 = vld [vmem:[#allocation7 + $0x8] sm:$0xff]
        %v474 = vld [vmem:[#allocation7 + $0x10] sm:$0xff]
        %v475 = vld [vmem:[#allocation7 + $0x18] sm:$0xff]
        %v476 = vld [vmem:[#allocation7 + $0x20] sm:$0xff]
        %v477 = vld [vmem:[#allocation7 + $0x28] sm:$0xff]
        %v478 = vld [vmem:[#allocation7 + $0x30] sm:$0xff]
        %v479 = vld [vmem:[#allocation7 + $0x38] sm:$0xff]
        %v480 = vld [vmem:[#allocation7 + $0x40] sm:$0xff]
        %v481 = vld [vmem:[#allocation7 + $0x48] sm:$0xff]
        %v482 = vld [vmem:[#allocation7 + $0x50] sm:$0xff]
        %v483 = vld [vmem:[#allocation7 + $0x58] sm:$0xff]
        %v484 = vld [vmem:[#allocation7 + $0x60] sm:$0xff]
        %v485 = vld [vmem:[#allocation7 + $0x68] sm:$0xff]
        %v486 = vld [vmem:[#allocation7 + $0x70] sm:$0xff]
        %v487 = vld [vmem:[#allocation7 + $0x78] sm:$0xff]
        %v488 = vld [vmem:[#allocation7 + $0x80] sm:$0xff]
        %v489 = vld [vmem:[#allocation7 + $0x88] sm:$0xff]
        %v490 = vld [vmem:[#allocation7 + $0x90] sm:$0xff]
        %v491 = vld [vmem:[#allocation7 + $0x98] sm:$0xff]
        %v492 = vld [vmem:[#allocation7 + $0xa0] sm:$0xff]
        %v493 = vld [vmem:[#allocation7 + $0xa8] sm:$0xff]
        %v494 = vld [vmem:[#allocation7 + $0xb0] sm:$0xff]
        %v495 = vld [vmem:[#allocation7 + $0xb8] sm:$0xff]
        %v496 = vld [vmem:[#allocation7 + $0xc0] sm:$0xff]
        %v497 = vld [vmem:[#allocation7 + $0xc8] sm:$0xff]
        %v498 = vld [vmem:[#allocation7 + $0xd0] sm:$0xff]
        %v499 = vld [vmem:[#allocation7 + $0xd8] sm:$0xff]
        %v500 = vld [vmem:[#allocation7 + $0xe0] sm:$0xff]
        %v501 = vld [vmem:[#allocation7 + $0xe8] sm:$0xff]
        %v502 = vld [vmem:[#allocation7 + $0xf0] sm:$0xff]
        %v503 = vld [vmem:[#allocation7 + $0xf8] sm:$0xff]
        %v504 = vld [vmem:[#allocation7 + $0x100] sm:$0xff]
        %v505 = vld [vmem:[#allocation7 + $0x108] sm:$0xff]
        %v506 = vld [vmem:[#allocation7 + $0x110] sm:$0xff]
        %v507 = vld [vmem:[#allocation7 + $0x118] sm:$0xff]
        %v508 = vld [vmem:[#allocation7 + $0x120] sm:$0xff]
        %v509 = vld [vmem:[#allocation7 + $0x128] sm:$0xff]
        %v510 = vld [vmem:[#allocation7 + $0x130] sm:$0xff]
        %v511 = vld [vmem:[#allocation7 + $0x138] sm:$0xff]
        %v512 = vld [vmem:[#allocation7 + $0x140] sm:$0xff]
        %v513 = vld [vmem:[#allocation7 + $0x148] sm:$0xff]
        %v514 = vld [vmem:[#allocation7 + $0x150] sm:$0xff]
        %v515 = vld [vmem:[#allocation7 + $0x158] sm:$0xff]
        %v516 = vld [vmem:[#allocation7 + $0x160] sm:$0xff]
        %v517 = vld [vmem:[#allocation7 + $0x168] sm:$0xff]
        %v518 = vld [vmem:[#allocation7 + $0x170] sm:$0xff]
        %v519 = vld [vmem:[#allocation7 + $0x178] sm:$0xff]
        %v520 = vld [vmem:[#allocation7 + $0x180] sm:$0xff]
        %v521 = vld [vmem:[#allocation7 + $0x188] sm:$0xff]
        %v522 = vld [vmem:[#allocation7 + $0x190] sm:$0xff]
        %v523 = vld [vmem:[#allocation7 + $0x198] sm:$0xff]
        %v524 = vld [vmem:[#allocation7 + $0x1a0] sm:$0xff]
        %v525 = vld [vmem:[#allocation7 + $0x1a8] sm:$0xff]
        %v526 = vld [vmem:[#allocation7 + $0x1b0] sm:$0xff]
        %v527 = vld [vmem:[#allocation7 + $0x1b8] sm:$0xff]
        %v528 = vld [vmem:[#allocation7 + $0x1c0] sm:$0xff]
        %v529 = vld [vmem:[#allocation7 + $0x1c8] sm:$0xff]
        %v530 = vld [vmem:[#allocation7 + $0x1d0] sm:$0xff]
        %v531 = vld [vmem:[#allocation7 + $0x1d8] sm:$0xff]
        %v532 = vld [vmem:[#allocation7 + $0x1e0] sm:$0xff]
        %v533 = vld [vmem:[#allocation7 + $0x1e8] sm:$0xff]
        %v534 = vld [vmem:[#allocation7 + $0x1f0] sm:$0xff]
        %v535 = vld [vmem:[#allocation7 + $0x1f8] sm:$0xff]
        %v536 = vld [vmem:[#allocation8] sm:$0xf]
        %v538 = vlaneseq
        %v539 = vshrl.u32 %v538, 7
        %v540 = vsub.s32 0, %v539
        %v541 = vrot.slane %v536, %v540
        %v542 = vlaneseq
        %v543 = vshrl.u32 %v542, 7
        %v544 = vsub.s32 1, %v543
        %v545 = vrot.slane %v536, %v544
        %v546 = vlaneseq
        %v547 = vshrl.u32 %v546, 7
        %v548 = vsub.s32 2, %v547
        %v549 = vrot.slane %v536, %v548
        %v550 = vlaneseq
        %v551 = vshrl.u32 %v550, 7
        %v552 = vsub.s32 3, %v551
        %v553 = vrot.slane %v536, %v552
        %v622 = vunpack.c.l.b16 %v472
        %v623 = vunpack.c.h.b16 %v472
        %v624 = vunpack.c.l.b16 %v473
        %v625 = vunpack.c.h.b16 %v473
        %v626 = vunpack.c.l.b16 %v474
        %v627 = vunpack.c.h.b16 %v474
        %v628 = vunpack.c.l.b16 %v475
        %v629 = vunpack.c.h.b16 %v475
        %v630 = vunpack.c.l.b16 %v476
        %v631 = vunpack.c.h.b16 %v476
        %v632 = vunpack.c.l.b16 %v477
        %v633 = vunpack.c.h.b16 %v477
        %v634 = vunpack.c.l.b16 %v478
        %v635 = vunpack.c.h.b16 %v478
        %v636 = vunpack.c.l.b16 %v479
        %v637 = vunpack.c.h.b16 %v479
        %v638 = vunpack.c.l.b16 %v480
        %v639 = vunpack.c.h.b16 %v480
        %v640 = vunpack.c.l.b16 %v481
        %v641 = vunpack.c.h.b16 %v481
        %v642 = vunpack.c.l.b16 %v482
        %v643 = vunpack.c.h.b16 %v482
        %v644 = vunpack.c.l.b16 %v483
        %v645 = vunpack.c.h.b16 %v483
        %v646 = vunpack.c.l.b16 %v484
        %v647 = vunpack.c.h.b16 %v484
        %v648 = vunpack.c.l.b16 %v485
        %v649 = vunpack.c.h.b16 %v485
        %v650 = vunpack.c.l.b16 %v486
        %v651 = vunpack.c.h.b16 %v486
        %v652 = vunpack.c.l.b16 %v487
        %v653 = vunpack.c.h.b16 %v487
        %v654 = vunpack.c.l.b16 %v488
        %v655 = vunpack.c.h.b16 %v488
        %v656 = vunpack.c.l.b16 %v489
        %v657 = vunpack.c.h.b16 %v489
        %v658 = vunpack.c.l.b16 %v490
        %v659 = vunpack.c.h.b16 %v490
        %v660 = vunpack.c.l.b16 %v491
        %v661 = vunpack.c.h.b16 %v491
        %v662 = vunpack.c.l.b16 %v492
        %v663 = vunpack.c.h.b16 %v492
        %v664 = vunpack.c.l.b16 %v493
        %v665 = vunpack.c.h.b16 %v493
        %v666 = vunpack.c.l.b16 %v494
        %v667 = vunpack.c.h.b16 %v494
        %v668 = vunpack.c.l.b16 %v495
        %v669 = vunpack.c.h.b16 %v495
        %v670 = vunpack.c.l.b16 %v496
        %v671 = vunpack.c.h.b16 %v496
        %v672 = vunpack.c.l.b16 %v497
        %v673 = vunpack.c.h.b16 %v497
        %v674 = vunpack.c.l.b16 %v498
        %v675 = vunpack.c.h.b16 %v498
        %v676 = vunpack.c.l.b16 %v499
        %v677 = vunpack.c.h.b16 %v499
        %v678 = vunpack.c.l.b16 %v500
        %v679 = vunpack.c.h.b16 %v500
        %v680 = vunpack.c.l.b16 %v501
        %v681 = vunpack.c.h.b16 %v501
        %v682 = vunpack.c.l.b16 %v502
        %v683 = vunpack.c.h.b16 %v502
        %v684 = vunpack.c.l.b16 %v503
        %v685 = vunpack.c.h.b16 %v503
        %v686 = vunpack.c.l.b16 %v504
        %v687 = vunpack.c.h.b16 %v504
        %v688 = vunpack.c.l.b16 %v505
        %v689 = vunpack.c.h.b16 %v505
        %v690 = vunpack.c.l.b16 %v506
        %v691 = vunpack.c.h.b16 %v506
        %v692 = vunpack.c.l.b16 %v507
        %v693 = vunpack.c.h.b16 %v507
        %v694 = vunpack.c.l.b16 %v508
        %v695 = vunpack.c.h.b16 %v508
        %v696 = vunpack.c.l.b16 %v509
        %v697 = vunpack.c.h.b16 %v509
        %v698 = vunpack.c.l.b16 %v510
        %v699 = vunpack.c.h.b16 %v510
        %v700 = vunpack.c.l.b16 %v511
        %v701 = vunpack.c.h.b16 %v511
        %v702 = vunpack.c.l.b16 %v512
        %v703 = vunpack.c.h.b16 %v512
        %v704 = vunpack.c.l.b16 %v513
        %v705 = vunpack.c.h.b16 %v513
        %v706 = vunpack.c.l.b16 %v514
        %v707 = vunpack.c.h.b16 %v514
        %v708 = vunpack.c.l.b16 %v515
        %v709 = vunpack.c.h.b16 %v515
        %v710 = vunpack.c.l.b16 %v516
        %v711 = vunpack.c.h.b16 %v516
        %v712 = vunpack.c.l.b16 %v517
        %v713 = vunpack.c.h.b16 %v517
        %v714 = vunpack.c.l.b16 %v518
        %v715 = vunpack.c.h.b16 %v518
        %v716 = vunpack.c.l.b16 %v519
        %v717 = vunpack.c.h.b16 %v519
        %v718 = vunpack.c.l.b16 %v520
        %v719 = vunpack.c.h.b16 %v520
        %v720 = vunpack.c.l.b16 %v521
        %v721 = vunpack.c.h.b16 %v521
        %v722 = vunpack.c.l.b16 %v522
        %v723 = vunpack.c.h.b16 %v522
        %v724 = vunpack.c.l.b16 %v523
        %v725 = vunpack.c.h.b16 %v523
        %v726 = vunpack.c.l.b16 %v524
        %v727 = vunpack.c.h.b16 %v524
        %v728 = vunpack.c.l.b16 %v525
        %v729 = vunpack.c.h.b16 %v525
        %v730 = vunpack.c.l.b16 %v526
        %v731 = vunpack.c.h.b16 %v526
        %v732 = vunpack.c.l.b16 %v527
        %v733 = vunpack.c.h.b16 %v527
        %v734 = vunpack.c.l.b16 %v528
        %v735 = vunpack.c.h.b16 %v528
        %v736 = vunpack.c.l.b16 %v529
        %v737 = vunpack.c.h.b16 %v529
        %v738 = vunpack.c.l.b16 %v530
        %v739 = vunpack.c.h.b16 %v530
        %v740 = vunpack.c.l.b16 %v531
        %v741 = vunpack.c.h.b16 %v531
        %v742 = vunpack.c.l.b16 %v532
        %v743 = vunpack.c.h.b16 %v532
        %v744 = vunpack.c.l.b16 %v533
        %v745 = vunpack.c.h.b16 %v533
        %v746 = vunpack.c.l.b16 %v534
        %v747 = vunpack.c.h.b16 %v534
        %v748 = vunpack.c.l.b16 %v535
        %v749 = vunpack.c.h.b16 %v535
        %v750 = vpack.c.b16 %v626, %v622
        %v751 = vpack.c.b16 %v627, %v623
        %v752 = vpack.c.b16 %v628, %v624
        %v753 = vpack.c.b16 %v629, %v625
        %v754 = vpack.c.b16 %v634, %v630
        %v755 = vpack.c.b16 %v635, %v631
        %v756 = vpack.c.b16 %v636, %v632
        %v757 = vpack.c.b16 %v637, %v633
        %v758 = vpack.c.b16 %v642, %v638
        %v759 = vpack.c.b16 %v643, %v639
        %v760 = vpack.c.b16 %v644, %v640
        %v761 = vpack.c.b16 %v645, %v641
        %v762 = vpack.c.b16 %v650, %v646
        %v763 = vpack.c.b16 %v651, %v647
        %v764 = vpack.c.b16 %v652, %v648
        %v765 = vpack.c.b16 %v653, %v649
        %v766 = vpack.c.b16 %v658, %v654
        %v767 = vpack.c.b16 %v659, %v655
        %v768 = vpack.c.b16 %v660, %v656
        %v769 = vpack.c.b16 %v661, %v657
        %v770 = vpack.c.b16 %v666, %v662
        %v771 = vpack.c.b16 %v667, %v663
        %v772 = vpack.c.b16 %v668, %v664
        %v773 = vpack.c.b16 %v669, %v665
        %v774 = vpack.c.b16 %v674, %v670
        %v775 = vpack.c.b16 %v675, %v671
        %v776 = vpack.c.b16 %v676, %v672
        %v777 = vpack.c.b16 %v677, %v673
        %v778 = vpack.c.b16 %v682, %v678
        %v779 = vpack.c.b16 %v683, %v679
        %v780 = vpack.c.b16 %v684, %v680
        %v781 = vpack.c.b16 %v685, %v681
        %v782 = vpack.c.b16 %v690, %v686
        %v783 = vpack.c.b16 %v691, %v687
        %v784 = vpack.c.b16 %v692, %v688
        %v785 = vpack.c.b16 %v693, %v689
        %v786 = vpack.c.b16 %v698, %v694
        %v787 = vpack.c.b16 %v699, %v695
        %v788 = vpack.c.b16 %v700, %v696
        %v789 = vpack.c.b16 %v701, %v697
        %v790 = vpack.c.b16 %v706, %v702
        %v791 = vpack.c.b16 %v707, %v703
        %v792 = vpack.c.b16 %v708, %v704
        %v793 = vpack.c.b16 %v709, %v705
        %v794 = vpack.c.b16 %v714, %v710
        %v795 = vpack.c.b16 %v715, %v711
        %v796 = vpack.c.b16 %v716, %v712
        %v797 = vpack.c.b16 %v717, %v713
        %v798 = vpack.c.b16 %v722, %v718
        %v799 = vpack.c.b16 %v723, %v719
        %v800 = vpack.c.b16 %v724, %v720
        %v801 = vpack.c.b16 %v725, %v721
        %v802 = vpack.c.b16 %v730, %v726
        %v803 = vpack.c.b16 %v731, %v727
        %v804 = vpack.c.b16 %v732, %v728
        %v805 = vpack.c.b16 %v733, %v729
        %v806 = vpack.c.b16 %v738, %v734
        %v807 = vpack.c.b16 %v739, %v735
        %v808 = vpack.c.b16 %v740, %v736
        %v809 = vpack.c.b16 %v741, %v737
        %v810 = vpack.c.b16 %v746, %v742
        %v811 = vpack.c.b16 %v747, %v743
        %v812 = vpack.c.b16 %v748, %v744
        %v813 = vpack.c.b16 %v749, %v745
        %878 = vmatprep.subr.bf16.mxu0 %v779
        %879 = vmatpush1.bf16.msra.mxu0 %v778
        %880 = vmatprep.subr.bf16.mxu0 %v775
        %881 = vmatpush1.bf16.msra.mxu0 %v774
        %882 = vmatprep.subr.bf16.mxu0 %v771
        %883 = vmatpush1.bf16.msra.mxu0 %v770
        %884 = vmatprep.subr.bf16.mxu0 %v767
        %885 = vmatpush1.bf16.msra.mxu0 %v766
        %886 = vmatprep.subr.bf16.mxu0 %v763
        %887 = vmatpush1.bf16.msra.mxu0 %v762
        %888 = vmatprep.subr.bf16.mxu0 %v759
        %889 = vmatpush1.bf16.msra.mxu0 %v758
        %890 = vmatprep.subr.bf16.mxu0 %v755
        %891 = vmatpush1.bf16.msra.mxu0 %v754
        %892 = vmatprep.subr.bf16.mxu0 %v751
        %893 = vmatpush1.bf16.msra.mxu0 %v750
        %894 = vmatprep.subr.bf16.mxu0 %v811
        %895 = vmatpush2.bf16.msra.mxu0 %v810
        %896 = vmatprep.subr.bf16.mxu0 %v807
        %897 = vmatpush2.bf16.msra.mxu0 %v806
        %898 = vmatprep.subr.bf16.mxu0 %v803
        %899 = vmatpush2.bf16.msra.mxu0 %v802
        %900 = vmatprep.subr.bf16.mxu0 %v799
        %901 = vmatpush2.bf16.msra.mxu0 %v798
        %902 = vmatprep.subr.bf16.mxu0 %v795
        %903 = vmatpush2.bf16.msra.mxu0 %v794
        %904 = vmatprep.subr.bf16.mxu0 %v791
        %905 = vmatpush2.bf16.msra.mxu0 %v790
        %906 = vmatprep.subr.bf16.mxu0 %v787
        %907 = vmatpush2.bf16.msra.mxu0 %v786
        %908 = vmatprep.subr.bf16.mxu0 %v783
        %909 = vmatpush2.bf16.msra.mxu0 %v782
        %910 = vmatprep.mubr.bf16.mxu0 %v471
        %911 = vmatmul.mubr.bf16.gmra.mxu0 %v470
        %v912 = vpop.f32.mrf.mxu0
        %v913 = vadd.f32 %v541, %v912
        %v914 = vpop.f32.mrf.mxu0
        %v915 = vadd.f32 %v545, %v914
        %v916 = vpop.f32.mrf.mxu0
        %v917 = vadd.f32 %v541, %v916
        %v918 = vpop.f32.mrf.mxu0
        %v919 = vadd.f32 %v545, %v918
        %920 = vdwg.mxu0
        %921 = vmatprep.subr.bf16.mxu0 %v781
        %922 = vmatpush1.bf16.msra.mxu0 %v780
        %923 = vmatprep.subr.bf16.mxu0 %v777
        %924 = vmatpush1.bf16.msra.mxu0 %v776
        %925 = vmatprep.subr.bf16.mxu0 %v773
        %926 = vmatpush1.bf16.msra.mxu0 %v772
        %927 = vmatprep.subr.bf16.mxu0 %v769
        %928 = vmatpush1.bf16.msra.mxu0 %v768
        %929 = vmatprep.subr.bf16.mxu0 %v765
        %930 = vmatpush1.bf16.msra.mxu0 %v764
        %931 = vmatprep.subr.bf16.mxu0 %v761
        %932 = vmatpush1.bf16.msra.mxu0 %v760
        %933 = vmatprep.subr.bf16.mxu0 %v757
        %934 = vmatpush1.bf16.msra.mxu0 %v756
        %935 = vmatprep.subr.bf16.mxu0 %v753
        %936 = vmatpush1.bf16.msra.mxu0 %v752
        %937 = vmatprep.subr.bf16.mxu0 %v813
        %938 = vmatpush2.bf16.msra.mxu0 %v812
        %939 = vmatprep.subr.bf16.mxu0 %v809
        %940 = vmatpush2.bf16.msra.mxu0 %v808
        %941 = vmatprep.subr.bf16.mxu0 %v805
        %942 = vmatpush2.bf16.msra.mxu0 %v804
        %943 = vmatprep.subr.bf16.mxu0 %v801
        %944 = vmatpush2.bf16.msra.mxu0 %v800
        %945 = vmatprep.subr.bf16.mxu0 %v797
        %946 = vmatpush2.bf16.msra.mxu0 %v796
        %947 = vmatprep.subr.bf16.mxu0 %v793
        %948 = vmatpush2.bf16.msra.mxu0 %v792
        %949 = vmatprep.subr.bf16.mxu0 %v789
        %950 = vmatpush2.bf16.msra.mxu0 %v788
        %951 = vmatprep.subr.bf16.mxu0 %v785
        %952 = vmatpush2.bf16.msra.mxu0 %v784
        %953 = vmatprep.mubr.bf16.mxu0 %v471
        %954 = vmatmul.mubr.bf16.gmra.mxu0 %v470
        %v955 = vpop.f32.mrf.mxu0
        %v956 = vadd.f32 %v549, %v955
        %v957 = vpop.f32.mrf.mxu0
        %v958 = vadd.f32 %v553, %v957
        %v959 = vpop.f32.mrf.mxu0
        %v960 = vadd.f32 %v549, %v959
        %v961 = vpop.f32.mrf.mxu0
        %v962 = vadd.f32 %v553, %v961
        %963 = vdwg.mxu0
        %v964 = vmax.f32 %v913, 0.0
        %v965 = vmax.f32 %v915, 0.0
        %v966 = vmax.f32 %v956, 0.0
        %v967 = vmax.f32 %v958, 0.0
        %v968 = vmax.f32 %v917, 0.0
        %v969 = vmax.f32 %v919, 0.0
        %v970 = vmax.f32 %v960, 0.0
        %v971 = vmax.f32 %v962, 0.0
        %v972 = vpack.c.bf16 %v968, %v964
        %v973 = vpack.c.bf16 %v969, %v965
        %v974 = vpack.c.bf16 %v970, %v966
        %v975 = vpack.c.bf16 %v971, %v967
        %v976 = vld [vmem:[#allocation10] sm:$0xff]
        %v977 = vld [vmem:[#allocation10 + $0x8] sm:$0xff]
        %v978 = vld [vmem:[#allocation10 + $0x10] sm:$0xff]
        %v979 = vld [vmem:[#allocation10 + $0x18] sm:$0xf]
        %v980 = vld [vmem:[#allocation10 + $0x1c] sm:$0xff]
        %v981 = vld [vmem:[#allocation10 + $0x24] sm:$0xff]
        %v982 = vld [vmem:[#allocation10 + $0x2c] sm:$0xff]
        %v983 = vld [vmem:[#allocation10 + $0x34] sm:$0xf]
        %v984 = vld [vmem:[#allocation10 + $0x38] sm:$0xff]
        %v985 = vld [vmem:[#allocation10 + $0x40] sm:$0xff]
        %v986 = vld [vmem:[#allocation10 + $0x48] sm:$0xff]
        %v987 = vld [vmem:[#allocation10 + $0x50] sm:$0xf]
        %v988 = vld [vmem:[#allocation10 + $0x54] sm:$0xff]
        %v989 = vld [vmem:[#allocation10 + $0x5c] sm:$0xff]
        %v990 = vld [vmem:[#allocation10 + $0x64] sm:$0xff]
        %v991 = vld [vmem:[#allocation10 + $0x6c] sm:$0xf]
        %v992 = vld [vmem:[#allocation10 + $0x70] sm:$0xff]
        %v993 = vld [vmem:[#allocation10 + $0x78] sm:$0xff]
        %v994 = vld [vmem:[#allocation10 + $0x80] sm:$0xff]
        %v995 = vld [vmem:[#allocation10 + $0x88] sm:$0xf]
        %v996 = vld [vmem:[#allocation10 + $0x8c] sm:$0xff]
        %v997 = vld [vmem:[#allocation10 + $0x94] sm:$0xff]
        %v998 = vld [vmem:[#allocation10 + $0x9c] sm:$0xff]
        %v999 = vld [vmem:[#allocation10 + $0xa4] sm:$0xf]
        %v1000 = vld [vmem:[#allocation10 + $0xa8] sm:$0xff]
        %v1001 = vld [vmem:[#allocation10 + $0xb0] sm:$0xff]
        %v1002 = vld [vmem:[#allocation10 + $0xb8] sm:$0xff]
        %v1003 = vld [vmem:[#allocation10 + $0xc0] sm:$0xf]
        %v1004 = vld [vmem:[#allocation10 + $0xc4] sm:$0xff]
        %v1005 = vld [vmem:[#allocation10 + $0xcc] sm:$0xff]
        %v1006 = vld [vmem:[#allocation10 + $0xd4] sm:$0xff]
        %v1007 = vld [vmem:[#allocation10 + $0xdc] sm:$0xf]
        %v1008 = vld [vmem:[#allocation10 + $0xe0] sm:$0xff]
        %v1009 = vld [vmem:[#allocation10 + $0xe8] sm:$0xff]
        %v1010 = vld [vmem:[#allocation10 + $0xf0] sm:$0xff]
        %v1011 = vld [vmem:[#allocation10 + $0xf8] sm:$0xf]
        %v1012 = vld [vmem:[#allocation10 + $0xfc] sm:$0xff]
        %v1013 = vld [vmem:[#allocation10 + $0x104] sm:$0xff]
        %v1014 = vld [vmem:[#allocation10 + $0x10c] sm:$0xff]
        %v1015 = vld [vmem:[#allocation10 + $0x114] sm:$0xf]
        %v1016 = vld [vmem:[#allocation10 + $0x118] sm:$0xff]
        %v1017 = vld [vmem:[#allocation10 + $0x120] sm:$0xff]
        %v1018 = vld [vmem:[#allocation10 + $0x128] sm:$0xff]
        %v1019 = vld [vmem:[#allocation10 + $0x130] sm:$0xf]
        %v1020 = vld [vmem:[#allocation10 + $0x134] sm:$0xff]
        %v1021 = vld [vmem:[#allocation10 + $0x13c] sm:$0xff]
        %v1022 = vld [vmem:[#allocation10 + $0x144] sm:$0xff]
        %v1023 = vld [vmem:[#allocation10 + $0x14c] sm:$0xf]
        %v1024 = vld [vmem:[#allocation10 + $0x150] sm:$0xff]
        %v1025 = vld [vmem:[#allocation10 + $0x158] sm:$0xff]
        %v1026 = vld [vmem:[#allocation10 + $0x160] sm:$0xff]
        %v1027 = vld [vmem:[#allocation10 + $0x168] sm:$0xf]
        %v1028 = vld [vmem:[#allocation10 + $0x16c] sm:$0xff]
        %v1029 = vld [vmem:[#allocation10 + $0x174] sm:$0xff]
        %v1030 = vld [vmem:[#allocation10 + $0x17c] sm:$0xff]
        %v1031 = vld [vmem:[#allocation10 + $0x184] sm:$0xf]
        %v1032 = vld [vmem:[#allocation10 + $0x188] sm:$0xff]
        %v1033 = vld [vmem:[#allocation10 + $0x190] sm:$0xff]
        %v1034 = vld [vmem:[#allocation10 + $0x198] sm:$0xff]
        %v1035 = vld [vmem:[#allocation10 + $0x1a0] sm:$0xf]
        %v1036 = vld [vmem:[#allocation10 + $0x1a4] sm:$0xff]
        %v1037 = vld [vmem:[#allocation10 + $0x1ac] sm:$0xff]
        %v1038 = vld [vmem:[#allocation10 + $0x1b4] sm:$0xff]
        %v1039 = vld [vmem:[#allocation10 + $0x1bc] sm:$0xf]
        %v1040 = vld [vmem:[#allocation10 + $0x1c0] sm:$0xff]
        %v1041 = vld [vmem:[#allocation10 + $0x1c8] sm:$0xff]
        %v1042 = vld [vmem:[#allocation10 + $0x1d0] sm:$0xff]
        %v1043 = vld [vmem:[#allocation10 + $0x1d8] sm:$0xf]
        %v1044 = vld [vmem:[#allocation10 + $0x1dc] sm:$0xff]
        %v1045 = vld [vmem:[#allocation10 + $0x1e4] sm:$0xff]
        %v1046 = vld [vmem:[#allocation10 + $0x1ec] sm:$0xff]
        %v1047 = vld [vmem:[#allocation10 + $0x1f4] sm:$0xf]
        %v1048 = vld [vmem:[#allocation10 + $0x1f8] sm:$0xff]
        %v1049 = vld [vmem:[#allocation10 + $0x200] sm:$0xff]
        %v1050 = vld [vmem:[#allocation10 + $0x208] sm:$0xff]
        %v1051 = vld [vmem:[#allocation10 + $0x210] sm:$0xf]
        %v1052 = vld [vmem:[#allocation10 + $0x214] sm:$0xff]
        %v1053 = vld [vmem:[#allocation10 + $0x21c] sm:$0xff]
        %v1054 = vld [vmem:[#allocation10 + $0x224] sm:$0xff]
        %v1055 = vld [vmem:[#allocation10 + $0x22c] sm:$0xf]
        %v1056 = vld [vmem:[#allocation10 + $0x230] sm:$0xff]
        %v1057 = vld [vmem:[#allocation10 + $0x238] sm:$0xff]
        %v1058 = vld [vmem:[#allocation10 + $0x240] sm:$0xff]
        %v1059 = vld [vmem:[#allocation10 + $0x248] sm:$0xf]
        %v1060 = vld [vmem:[#allocation10 + $0x24c] sm:$0xff]
        %v1061 = vld [vmem:[#allocation10 + $0x254] sm:$0xff]
        %v1062 = vld [vmem:[#allocation10 + $0x25c] sm:$0xff]
        %v1063 = vld [vmem:[#allocation10 + $0x264] sm:$0xf]
        %v1064 = vld [vmem:[#allocation10 + $0x268] sm:$0xff]
        %v1065 = vld [vmem:[#allocation10 + $0x270] sm:$0xff]
        %v1066 = vld [vmem:[#allocation10 + $0x278] sm:$0xff]
        %v1067 = vld [vmem:[#allocation10 + $0x280] sm:$0xf]
        %v1068 = vld [vmem:[#allocation10 + $0x284] sm:$0xff]
        %v1069 = vld [vmem:[#allocation10 + $0x28c] sm:$0xff]
        %v1070 = vld [vmem:[#allocation10 + $0x294] sm:$0xff]
        %v1071 = vld [vmem:[#allocation10 + $0x29c] sm:$0xf]
        %v1072 = vld [vmem:[#allocation10 + $0x2a0] sm:$0xff]
        %v1073 = vld [vmem:[#allocation10 + $0x2a8] sm:$0xff]
        %v1074 = vld [vmem:[#allocation10 + $0x2b0] sm:$0xff]
        %v1075 = vld [vmem:[#allocation10 + $0x2b8] sm:$0xf]
        %v1076 = vld [vmem:[#allocation10 + $0x2bc] sm:$0xff]
        %v1077 = vld [vmem:[#allocation10 + $0x2c4] sm:$0xff]
        %v1078 = vld [vmem:[#allocation10 + $0x2cc] sm:$0xff]
        %v1079 = vld [vmem:[#allocation10 + $0x2d4] sm:$0xf]
        %v1080 = vld [vmem:[#allocation10 + $0x2d8] sm:$0xff]
        %v1081 = vld [vmem:[#allocation10 + $0x2e0] sm:$0xff]
        %v1082 = vld [vmem:[#allocation10 + $0x2e8] sm:$0xff]
        %v1083 = vld [vmem:[#allocation10 + $0x2f0] sm:$0xf]
        %v1084 = vld [vmem:[#allocation10 + $0x2f4] sm:$0xff]
        %v1085 = vld [vmem:[#allocation10 + $0x2fc] sm:$0xff]
        %v1086 = vld [vmem:[#allocation10 + $0x304] sm:$0xff]
        %v1087 = vld [vmem:[#allocation10 + $0x30c] sm:$0xf]
        %v1088 = vld [vmem:[#allocation10 + $0x310] sm:$0xff]
        %v1089 = vld [vmem:[#allocation10 + $0x318] sm:$0xff]
        %v1090 = vld [vmem:[#allocation10 + $0x320] sm:$0xff]
        %v1091 = vld [vmem:[#allocation10 + $0x328] sm:$0xf]
        %v1092 = vld [vmem:[#allocation10 + $0x32c] sm:$0xff]
        %v1093 = vld [vmem:[#allocation10 + $0x334] sm:$0xff]
        %v1094 = vld [vmem:[#allocation10 + $0x33c] sm:$0xff]
        %v1095 = vld [vmem:[#allocation10 + $0x344] sm:$0xf]
        %v1096 = vld [vmem:[#allocation10 + $0x348] sm:$0xff]
        %v1097 = vld [vmem:[#allocation10 + $0x350] sm:$0xff]
        %v1098 = vld [vmem:[#allocation10 + $0x358] sm:$0xff]
        %v1099 = vld [vmem:[#allocation10 + $0x360] sm:$0xf]
        %v1100 = vld [vmem:[#allocation10 + $0x364] sm:$0xff]
        %v1101 = vld [vmem:[#allocation10 + $0x36c] sm:$0xff]
        %v1102 = vld [vmem:[#allocation10 + $0x374] sm:$0xff]
        %v1103 = vld [vmem:[#allocation10 + $0x37c] sm:$0xf]
        %v1104 = vld [vmem:[#allocation10 + $0x380] sm:$0xff]
        %v1105 = vld [vmem:[#allocation10 + $0x388] sm:$0xff]
        %v1106 = vld [vmem:[#allocation10 + $0x390] sm:$0xff]
        %v1107 = vld [vmem:[#allocation10 + $0x398] sm:$0xf]
        %v1108 = vld [vmem:[#allocation10 + $0x39c] sm:$0xff]
        %v1109 = vld [vmem:[#allocation10 + $0x3a4] sm:$0xff]
        %v1110 = vld [vmem:[#allocation10 + $0x3ac] sm:$0xff]
        %v1111 = vld [vmem:[#allocation10 + $0x3b4] sm:$0xf]
        %v1112 = vld [vmem:[#allocation10 + $0x3b8] sm:$0xff]
        %v1113 = vld [vmem:[#allocation10 + $0x3c0] sm:$0xff]
        %v1114 = vld [vmem:[#allocation10 + $0x3c8] sm:$0xff]
        %v1115 = vld [vmem:[#allocation10 + $0x3d0] sm:$0xf]
        %v1116 = vld [vmem:[#allocation10 + $0x3d4] sm:$0xff]
        %v1117 = vld [vmem:[#allocation10 + $0x3dc] sm:$0xff]
        %v1118 = vld [vmem:[#allocation10 + $0x3e4] sm:$0xff]
        %v1119 = vld [vmem:[#allocation10 + $0x3ec] sm:$0xf]
        %v1120 = vld [vmem:[#allocation10 + $0x3f0] sm:$0xff]
        %v1121 = vld [vmem:[#allocation10 + $0x3f8] sm:$0xff]
        %v1122 = vld [vmem:[#allocation10 + $0x400] sm:$0xff]
        %v1123 = vld [vmem:[#allocation10 + $0x408] sm:$0xf]
        %v1124 = vld [vmem:[#allocation10 + $0x40c] sm:$0xff]
        %v1125 = vld [vmem:[#allocation10 + $0x414] sm:$0xff]
        %v1126 = vld [vmem:[#allocation10 + $0x41c] sm:$0xff]
        %v1127 = vld [vmem:[#allocation10 + $0x424] sm:$0xf]
        %v1128 = vld [vmem:[#allocation10 + $0x428] sm:$0xff]
        %v1129 = vld [vmem:[#allocation10 + $0x430] sm:$0xff]
        %v1130 = vld [vmem:[#allocation10 + $0x438] sm:$0xff]
        %v1131 = vld [vmem:[#allocation10 + $0x440] sm:$0xf]
        %v1132 = vld [vmem:[#allocation10 + $0x444] sm:$0xff]
        %v1133 = vld [vmem:[#allocation10 + $0x44c] sm:$0xff]
        %v1134 = vld [vmem:[#allocation10 + $0x454] sm:$0xff]
        %v1135 = vld [vmem:[#allocation10 + $0x45c] sm:$0xf]
        %v1136 = vld [vmem:[#allocation10 + $0x460] sm:$0xff]
        %v1137 = vld [vmem:[#allocation10 + $0x468] sm:$0xff]
        %v1138 = vld [vmem:[#allocation10 + $0x470] sm:$0xff]
        %v1139 = vld [vmem:[#allocation10 + $0x478] sm:$0xf]
        %v1140 = vld [vmem:[#allocation10 + $0x47c] sm:$0xff]
        %v1141 = vld [vmem:[#allocation10 + $0x484] sm:$0xff]
        %v1142 = vld [vmem:[#allocation10 + $0x48c] sm:$0xff]
        %v1143 = vld [vmem:[#allocation10 + $0x494] sm:$0xf]
        %v1144 = vld [vmem:[#allocation10 + $0x498] sm:$0xff]
        %v1145 = vld [vmem:[#allocation10 + $0x4a0] sm:$0xff]
        %v1146 = vld [vmem:[#allocation10 + $0x4a8] sm:$0xff]
        %v1147 = vld [vmem:[#allocation10 + $0x4b0] sm:$0xf]
        %v1148 = vld [vmem:[#allocation10 + $0x4b4] sm:$0xff]
        %v1149 = vld [vmem:[#allocation10 + $0x4bc] sm:$0xff]
        %v1150 = vld [vmem:[#allocation10 + $0x4c4] sm:$0xff]
        %v1151 = vld [vmem:[#allocation10 + $0x4cc] sm:$0xf]
        %v1152 = vld [vmem:[#allocation10 + $0x4d0] sm:$0xff]
        %v1153 = vld [vmem:[#allocation10 + $0x4d8] sm:$0xff]
        %v1154 = vld [vmem:[#allocation10 + $0x4e0] sm:$0xff]
        %v1155 = vld [vmem:[#allocation10 + $0x4e8] sm:$0xf]
        %v1156 = vld [vmem:[#allocation10 + $0x4ec] sm:$0xff]
        %v1157 = vld [vmem:[#allocation10 + $0x4f4] sm:$0xff]
        %v1158 = vld [vmem:[#allocation10 + $0x4fc] sm:$0xff]
        %v1159 = vld [vmem:[#allocation10 + $0x504] sm:$0xf]
        %v1160 = vld [vmem:[#allocation10 + $0x508] sm:$0xff]
        %v1161 = vld [vmem:[#allocation10 + $0x510] sm:$0xff]
        %v1162 = vld [vmem:[#allocation10 + $0x518] sm:$0xff]
        %v1163 = vld [vmem:[#allocation10 + $0x520] sm:$0xf]
        %v1164 = vld [vmem:[#allocation10 + $0x524] sm:$0xff]
        %v1165 = vld [vmem:[#allocation10 + $0x52c] sm:$0xff]
        %v1166 = vld [vmem:[#allocation10 + $0x534] sm:$0xff]
        %v1167 = vld [vmem:[#allocation10 + $0x53c] sm:$0xf]
        %v1168 = vld [vmem:[#allocation10 + $0x540] sm:$0xff]
        %v1169 = vld [vmem:[#allocation10 + $0x548] sm:$0xff]
        %v1170 = vld [vmem:[#allocation10 + $0x550] sm:$0xff]
        %v1171 = vld [vmem:[#allocation10 + $0x558] sm:$0xf]
        %v1172 = vld [vmem:[#allocation10 + $0x55c] sm:$0xff]
        %v1173 = vld [vmem:[#allocation10 + $0x564] sm:$0xff]
        %v1174 = vld [vmem:[#allocation10 + $0x56c] sm:$0xff]
        %v1175 = vld [vmem:[#allocation10 + $0x574] sm:$0xf]
        %v1176 = vld [vmem:[#allocation10 + $0x578] sm:$0xff]
        %v1177 = vld [vmem:[#allocation10 + $0x580] sm:$0xff]
        %v1178 = vld [vmem:[#allocation10 + $0x588] sm:$0xff]
        %v1179 = vld [vmem:[#allocation10 + $0x590] sm:$0xf]
        %v1180 = vld [vmem:[#allocation10 + $0x594] sm:$0xff]
        %v1181 = vld [vmem:[#allocation10 + $0x59c] sm:$0xff]
        %v1182 = vld [vmem:[#allocation10 + $0x5a4] sm:$0xff]
        %v1183 = vld [vmem:[#allocation10 + $0x5ac] sm:$0xf]
        %v1184 = vld [vmem:[#allocation10 + $0x5b0] sm:$0xff]
        %v1185 = vld [vmem:[#allocation10 + $0x5b8] sm:$0xff]
        %v1186 = vld [vmem:[#allocation10 + $0x5c0] sm:$0xff]
        %v1187 = vld [vmem:[#allocation10 + $0x5c8] sm:$0xf]
        %v1188 = vld [vmem:[#allocation10 + $0x5cc] sm:$0xff]
        %v1189 = vld [vmem:[#allocation10 + $0x5d4] sm:$0xff]
        %v1190 = vld [vmem:[#allocation10 + $0x5dc] sm:$0xff]
        %v1191 = vld [vmem:[#allocation10 + $0x5e4] sm:$0xf]
        %v1192 = vld [vmem:[#allocation10 + $0x5e8] sm:$0xff]
        %v1193 = vld [vmem:[#allocation10 + $0x5f0] sm:$0xff]
        %v1194 = vld [vmem:[#allocation10 + $0x5f8] sm:$0xff]
        %v1195 = vld [vmem:[#allocation10 + $0x600] sm:$0xf]
        %v1196 = vld [vmem:[#allocation10 + $0x604] sm:$0xff]
        %v1197 = vld [vmem:[#allocation10 + $0x60c] sm:$0xff]
        %v1198 = vld [vmem:[#allocation10 + $0x614] sm:$0xff]
        %v1199 = vld [vmem:[#allocation10 + $0x61c] sm:$0xf]
        %v1200 = vld [vmem:[#allocation10 + $0x620] sm:$0xff]
        %v1201 = vld [vmem:[#allocation10 + $0x628] sm:$0xff]
        %v1202 = vld [vmem:[#allocation10 + $0x630] sm:$0xff]
        %v1203 = vld [vmem:[#allocation10 + $0x638] sm:$0xf]
        %v1204 = vld [vmem:[#allocation10 + $0x63c] sm:$0xff]
        %v1205 = vld [vmem:[#allocation10 + $0x644] sm:$0xff]
        %v1206 = vld [vmem:[#allocation10 + $0x64c] sm:$0xff]
        %v1207 = vld [vmem:[#allocation10 + $0x654] sm:$0xf]
        %v1208 = vld [vmem:[#allocation10 + $0x658] sm:$0xff]
        %v1209 = vld [vmem:[#allocation10 + $0x660] sm:$0xff]
        %v1210 = vld [vmem:[#allocation10 + $0x668] sm:$0xff]
        %v1211 = vld [vmem:[#allocation10 + $0x670] sm:$0xf]
        %v1212 = vld [vmem:[#allocation10 + $0x674] sm:$0xff]
        %v1213 = vld [vmem:[#allocation10 + $0x67c] sm:$0xff]
        %v1214 = vld [vmem:[#allocation10 + $0x684] sm:$0xff]
        %v1215 = vld [vmem:[#allocation10 + $0x68c] sm:$0xf]
        %v1216 = vld [vmem:[#allocation10 + $0x690] sm:$0xff]
        %v1217 = vld [vmem:[#allocation10 + $0x698] sm:$0xff]
        %v1218 = vld [vmem:[#allocation10 + $0x6a0] sm:$0xff]
        %v1219 = vld [vmem:[#allocation10 + $0x6a8] sm:$0xf]
        %v1220 = vld [vmem:[#allocation10 + $0x6ac] sm:$0xff]
        %v1221 = vld [vmem:[#allocation10 + $0x6b4] sm:$0xff]
        %v1222 = vld [vmem:[#allocation10 + $0x6bc] sm:$0xff]
        %v1223 = vld [vmem:[#allocation10 + $0x6c4] sm:$0xf]
        %v1224 = vld [vmem:[#allocation10 + $0x6c8] sm:$0xff]
        %v1225 = vld [vmem:[#allocation10 + $0x6d0] sm:$0xff]
        %v1226 = vld [vmem:[#allocation10 + $0x6d8] sm:$0xff]
        %v1227 = vld [vmem:[#allocation10 + $0x6e0] sm:$0xf]
        %v1228 = vld [vmem:[#allocation10 + $0x6e4] sm:$0xff]
        %v1229 = vld [vmem:[#allocation10 + $0x6ec] sm:$0xff]
        %v1230 = vld [vmem:[#allocation10 + $0x6f4] sm:$0xff]
        %v1231 = vld [vmem:[#allocation10 + $0x6fc] sm:$0xf]
        %v1232 = vld [vmem:[%s6] sm:$0xff]
        %v1234 = vlaneseq
        %v1235 = vshrl.u32 %v1234, 7
        %v1236 = vsub.s32 0, %v1235
        %v1237 = vrot.slane %v1232, %v1236
        %v1238 = vlaneseq
        %v1239 = vshrl.u32 %v1238, 7
        %v1240 = vsub.s32 1, %v1239
        %v1241 = vrot.slane %v1232, %v1240
        %v1242 = vlaneseq
        %v1243 = vshrl.u32 %v1242, 7
        %v1244 = vsub.s32 2, %v1243
        %v1245 = vrot.slane %v1232, %v1244
        %v1246 = vlaneseq
        %v1247 = vshrl.u32 %v1246, 7
        %v1248 = vsub.s32 3, %v1247
        %v1249 = vrot.slane %v1232, %v1248
        %v1250 = vlaneseq
        %v1251 = vshrl.u32 %v1250, 7
        %v1252 = vsub.s32 4, %v1251
        %v1253 = vrot.slane %v1232, %v1252
        %v1254 = vlaneseq
        %v1255 = vshrl.u32 %v1254, 7
        %v1256 = vsub.s32 5, %v1255
        %v1257 = vrot.slane %v1232, %v1256
        %v1258 = vlaneseq
        %v1259 = vshrl.u32 %v1258, 7
        %v1260 = vsub.s32 6, %v1259
        %v1261 = vrot.slane %v1232, %v1260
        %v1525 = vunpack.c.l.b16 %v976
        %v1526 = vunpack.c.h.b16 %v976
        %v1527 = vunpack.c.l.b16 %v977
        %v1528 = vunpack.c.h.b16 %v977
        %v1529 = vunpack.c.l.b16 %v978
        %v1530 = vunpack.c.h.b16 %v978
        %v1531 = vunpack.c.l.b16 %v979
        %v1532 = vunpack.c.l.b16 %v980
        %v1533 = vunpack.c.h.b16 %v980
        %v1534 = vunpack.c.l.b16 %v981
        %v1535 = vunpack.c.h.b16 %v981
        %v1536 = vunpack.c.l.b16 %v982
        %v1537 = vunpack.c.h.b16 %v982
        %v1538 = vunpack.c.l.b16 %v983
        %v1539 = vunpack.c.l.b16 %v984
        %v1540 = vunpack.c.h.b16 %v984
        %v1541 = vunpack.c.l.b16 %v985
        %v1542 = vunpack.c.h.b16 %v985
        %v1543 = vunpack.c.l.b16 %v986
        %v1544 = vunpack.c.h.b16 %v986
        %v1545 = vunpack.c.l.b16 %v987
        %v1546 = vunpack.c.l.b16 %v988
        %v1547 = vunpack.c.h.b16 %v988
        %v1548 = vunpack.c.l.b16 %v989
        %v1549 = vunpack.c.h.b16 %v989
        %v1550 = vunpack.c.l.b16 %v990
        %v1551 = vunpack.c.h.b16 %v990
        %v1552 = vunpack.c.l.b16 %v991
        %v1553 = vunpack.c.l.b16 %v992
        %v1554 = vunpack.c.h.b16 %v992
        %v1555 = vunpack.c.l.b16 %v993
        %v1556 = vunpack.c.h.b16 %v993
        %v1557 = vunpack.c.l.b16 %v994
        %v1558 = vunpack.c.h.b16 %v994
        %v1559 = vunpack.c.l.b16 %v995
        %v1560 = vunpack.c.l.b16 %v996
        %v1561 = vunpack.c.h.b16 %v996
        %v1562 = vunpack.c.l.b16 %v997
        %v1563 = vunpack.c.h.b16 %v997
        %v1564 = vunpack.c.l.b16 %v998
        %v1565 = vunpack.c.h.b16 %v998
        %v1566 = vunpack.c.l.b16 %v999
        %v1567 = vunpack.c.l.b16 %v1000
        %v1568 = vunpack.c.h.b16 %v1000
        %v1569 = vunpack.c.l.b16 %v1001
        %v1570 = vunpack.c.h.b16 %v1001
        %v1571 = vunpack.c.l.b16 %v1002
        %v1572 = vunpack.c.h.b16 %v1002
        %v1573 = vunpack.c.l.b16 %v1003
        %v1574 = vunpack.c.l.b16 %v1004
        %v1575 = vunpack.c.h.b16 %v1004
        %v1576 = vunpack.c.l.b16 %v1005
        %v1577 = vunpack.c.h.b16 %v1005
        %v1578 = vunpack.c.l.b16 %v1006
        %v1579 = vunpack.c.h.b16 %v1006
        %v1580 = vunpack.c.l.b16 %v1007
        %v1581 = vunpack.c.l.b16 %v1008
        %v1582 = vunpack.c.h.b16 %v1008
        %v1583 = vunpack.c.l.b16 %v1009
        %v1584 = vunpack.c.h.b16 %v1009
        %v1585 = vunpack.c.l.b16 %v1010
        %v1586 = vunpack.c.h.b16 %v1010
        %v1587 = vunpack.c.l.b16 %v1011
        %v1588 = vunpack.c.l.b16 %v1012
        %v1589 = vunpack.c.h.b16 %v1012
        %v1590 = vunpack.c.l.b16 %v1013
        %v1591 = vunpack.c.h.b16 %v1013
        %v1592 = vunpack.c.l.b16 %v1014
        %v1593 = vunpack.c.h.b16 %v1014
        %v1594 = vunpack.c.l.b16 %v1015
        %v1595 = vunpack.c.l.b16 %v1016
        %v1596 = vunpack.c.h.b16 %v1016
        %v1597 = vunpack.c.l.b16 %v1017
        %v1598 = vunpack.c.h.b16 %v1017
        %v1599 = vunpack.c.l.b16 %v1018
        %v1600 = vunpack.c.h.b16 %v1018
        %v1601 = vunpack.c.l.b16 %v1019
        %v1602 = vunpack.c.l.b16 %v1020
        %v1603 = vunpack.c.h.b16 %v1020
        %v1604 = vunpack.c.l.b16 %v1021
        %v1605 = vunpack.c.h.b16 %v1021
        %v1606 = vunpack.c.l.b16 %v1022
        %v1607 = vunpack.c.h.b16 %v1022
        %v1608 = vunpack.c.l.b16 %v1023
        %v1609 = vunpack.c.l.b16 %v1024
        %v1610 = vunpack.c.h.b16 %v1024
        %v1611 = vunpack.c.l.b16 %v1025
        %v1612 = vunpack.c.h.b16 %v1025
        %v1613 = vunpack.c.l.b16 %v1026
        %v1614 = vunpack.c.h.b16 %v1026
        %v1615 = vunpack.c.l.b16 %v1027
        %v1616 = vunpack.c.l.b16 %v1028
        %v1617 = vunpack.c.h.b16 %v1028
        %v1618 = vunpack.c.l.b16 %v1029
        %v1619 = vunpack.c.h.b16 %v1029
        %v1620 = vunpack.c.l.b16 %v1030
        %v1621 = vunpack.c.h.b16 %v1030
        %v1622 = vunpack.c.l.b16 %v1031
        %v1623 = vunpack.c.l.b16 %v1032
        %v1624 = vunpack.c.h.b16 %v1032
        %v1625 = vunpack.c.l.b16 %v1033
        %v1626 = vunpack.c.h.b16 %v1033
        %v1627 = vunpack.c.l.b16 %v1034
        %v1628 = vunpack.c.h.b16 %v1034
        %v1629 = vunpack.c.l.b16 %v1035
        %v1630 = vunpack.c.l.b16 %v1036
        %v1631 = vunpack.c.h.b16 %v1036
        %v1632 = vunpack.c.l.b16 %v1037
        %v1633 = vunpack.c.h.b16 %v1037
        %v1634 = vunpack.c.l.b16 %v1038
        %v1635 = vunpack.c.h.b16 %v1038
        %v1636 = vunpack.c.l.b16 %v1039
        %v1637 = vunpack.c.l.b16 %v1040
        %v1638 = vunpack.c.h.b16 %v1040
        %v1639 = vunpack.c.l.b16 %v1041
        %v1640 = vunpack.c.h.b16 %v1041
        %v1641 = vunpack.c.l.b16 %v1042
        %v1642 = vunpack.c.h.b16 %v1042
        %v1643 = vunpack.c.l.b16 %v1043
        %v1644 = vunpack.c.l.b16 %v1044
        %v1645 = vunpack.c.h.b16 %v1044
        %v1646 = vunpack.c.l.b16 %v1045
        %v1647 = vunpack.c.h.b16 %v1045
        %v1648 = vunpack.c.l.b16 %v1046
        %v1649 = vunpack.c.h.b16 %v1046
        %v1650 = vunpack.c.l.b16 %v1047
        %v1651 = vunpack.c.l.b16 %v1048
        %v1652 = vunpack.c.h.b16 %v1048
        %v1653 = vunpack.c.l.b16 %v1049
        %v1654 = vunpack.c.h.b16 %v1049
        %v1655 = vunpack.c.l.b16 %v1050
        %v1656 = vunpack.c.h.b16 %v1050
        %v1657 = vunpack.c.l.b16 %v1051
        %v1658 = vunpack.c.l.b16 %v1052
        %v1659 = vunpack.c.h.b16 %v1052
        %v1660 = vunpack.c.l.b16 %v1053
        %v1661 = vunpack.c.h.b16 %v1053
        %v1662 = vunpack.c.l.b16 %v1054
        %v1663 = vunpack.c.h.b16 %v1054
        %v1664 = vunpack.c.l.b16 %v1055
        %v1665 = vunpack.c.l.b16 %v1056
        %v1666 = vunpack.c.h.b16 %v1056
        %v1667 = vunpack.c.l.b16 %v1057
        %v1668 = vunpack.c.h.b16 %v1057
        %v1669 = vunpack.c.l.b16 %v1058
        %v1670 = vunpack.c.h.b16 %v1058
        %v1671 = vunpack.c.l.b16 %v1059
        %v1672 = vunpack.c.l.b16 %v1060
        %v1673 = vunpack.c.h.b16 %v1060
        %v1674 = vunpack.c.l.b16 %v1061
        %v1675 = vunpack.c.h.b16 %v1061
        %v1676 = vunpack.c.l.b16 %v1062
        %v1677 = vunpack.c.h.b16 %v1062
        %v1678 = vunpack.c.l.b16 %v1063
        %v1679 = vunpack.c.l.b16 %v1064
        %v1680 = vunpack.c.h.b16 %v1064
        %v1681 = vunpack.c.l.b16 %v1065
        %v1682 = vunpack.c.h.b16 %v1065
        %v1683 = vunpack.c.l.b16 %v1066
        %v1684 = vunpack.c.h.b16 %v1066
        %v1685 = vunpack.c.l.b16 %v1067
        %v1686 = vunpack.c.l.b16 %v1068
        %v1687 = vunpack.c.h.b16 %v1068
        %v1688 = vunpack.c.l.b16 %v1069
        %v1689 = vunpack.c.h.b16 %v1069
        %v1690 = vunpack.c.l.b16 %v1070
        %v1691 = vunpack.c.h.b16 %v1070
        %v1692 = vunpack.c.l.b16 %v1071
        %v1693 = vunpack.c.l.b16 %v1072
        %v1694 = vunpack.c.h.b16 %v1072
        %v1695 = vunpack.c.l.b16 %v1073
        %v1696 = vunpack.c.h.b16 %v1073
        %v1697 = vunpack.c.l.b16 %v1074
        %v1698 = vunpack.c.h.b16 %v1074
        %v1699 = vunpack.c.l.b16 %v1075
        %v1700 = vunpack.c.l.b16 %v1076
        %v1701 = vunpack.c.h.b16 %v1076
        %v1702 = vunpack.c.l.b16 %v1077
        %v1703 = vunpack.c.h.b16 %v1077
        %v1704 = vunpack.c.l.b16 %v1078
        %v1705 = vunpack.c.h.b16 %v1078
        %v1706 = vunpack.c.l.b16 %v1079
        %v1707 = vunpack.c.l.b16 %v1080
        %v1708 = vunpack.c.h.b16 %v1080
        %v1709 = vunpack.c.l.b16 %v1081
        %v1710 = vunpack.c.h.b16 %v1081
        %v1711 = vunpack.c.l.b16 %v1082
        %v1712 = vunpack.c.h.b16 %v1082
        %v1713 = vunpack.c.l.b16 %v1083
        %v1714 = vunpack.c.l.b16 %v1084
        %v1715 = vunpack.c.h.b16 %v1084
        %v1716 = vunpack.c.l.b16 %v1085
        %v1717 = vunpack.c.h.b16 %v1085
        %v1718 = vunpack.c.l.b16 %v1086
        %v1719 = vunpack.c.h.b16 %v1086
        %v1720 = vunpack.c.l.b16 %v1087
        %v1721 = vunpack.c.l.b16 %v1088
        %v1722 = vunpack.c.h.b16 %v1088
        %v1723 = vunpack.c.l.b16 %v1089
        %v1724 = vunpack.c.h.b16 %v1089
        %v1725 = vunpack.c.l.b16 %v1090
        %v1726 = vunpack.c.h.b16 %v1090
        %v1727 = vunpack.c.l.b16 %v1091
        %v1728 = vunpack.c.l.b16 %v1092
        %v1729 = vunpack.c.h.b16 %v1092
        %v1730 = vunpack.c.l.b16 %v1093
        %v1731 = vunpack.c.h.b16 %v1093
        %v1732 = vunpack.c.l.b16 %v1094
        %v1733 = vunpack.c.h.b16 %v1094
        %v1734 = vunpack.c.l.b16 %v1095
        %v1735 = vunpack.c.l.b16 %v1096
        %v1736 = vunpack.c.h.b16 %v1096
        %v1737 = vunpack.c.l.b16 %v1097
        %v1738 = vunpack.c.h.b16 %v1097
        %v1739 = vunpack.c.l.b16 %v1098
        %v1740 = vunpack.c.h.b16 %v1098
        %v1741 = vunpack.c.l.b16 %v1099
        %v1742 = vunpack.c.l.b16 %v1100
        %v1743 = vunpack.c.h.b16 %v1100
        %v1744 = vunpack.c.l.b16 %v1101
        %v1745 = vunpack.c.h.b16 %v1101
        %v1746 = vunpack.c.l.b16 %v1102
        %v1747 = vunpack.c.h.b16 %v1102
        %v1748 = vunpack.c.l.b16 %v1103
        %v1749 = vunpack.c.l.b16 %v1104
        %v1750 = vunpack.c.h.b16 %v1104
        %v1751 = vunpack.c.l.b16 %v1105
        %v1752 = vunpack.c.h.b16 %v1105
        %v1753 = vunpack.c.l.b16 %v1106
        %v1754 = vunpack.c.h.b16 %v1106
        %v1755 = vunpack.c.l.b16 %v1107
        %v1756 = vunpack.c.l.b16 %v1108
        %v1757 = vunpack.c.h.b16 %v1108
        %v1758 = vunpack.c.l.b16 %v1109
        %v1759 = vunpack.c.h.b16 %v1109
        %v1760 = vunpack.c.l.b16 %v1110
        %v1761 = vunpack.c.h.b16 %v1110
        %v1762 = vunpack.c.l.b16 %v1111
        %v1763 = vunpack.c.l.b16 %v1112
        %v1764 = vunpack.c.h.b16 %v1112
        %v1765 = vunpack.c.l.b16 %v1113
        %v1766 = vunpack.c.h.b16 %v1113
        %v1767 = vunpack.c.l.b16 %v1114
        %v1768 = vunpack.c.h.b16 %v1114
        %v1769 = vunpack.c.l.b16 %v1115
        %v1770 = vunpack.c.l.b16 %v1116
        %v1771 = vunpack.c.h.b16 %v1116
        %v1772 = vunpack.c.l.b16 %v1117
        %v1773 = vunpack.c.h.b16 %v1117
        %v1774 = vunpack.c.l.b16 %v1118
        %v1775 = vunpack.c.h.b16 %v1118
        %v1776 = vunpack.c.l.b16 %v1119
        %v1777 = vunpack.c.l.b16 %v1120
        %v1778 = vunpack.c.h.b16 %v1120
        %v1779 = vunpack.c.l.b16 %v1121
        %v1780 = vunpack.c.h.b16 %v1121
        %v1781 = vunpack.c.l.b16 %v1122
        %v1782 = vunpack.c.h.b16 %v1122
        %v1783 = vunpack.c.l.b16 %v1123
        %v1784 = vunpack.c.l.b16 %v1124
        %v1785 = vunpack.c.h.b16 %v1124
        %v1786 = vunpack.c.l.b16 %v1125
        %v1787 = vunpack.c.h.b16 %v1125
        %v1788 = vunpack.c.l.b16 %v1126
        %v1789 = vunpack.c.h.b16 %v1126
        %v1790 = vunpack.c.l.b16 %v1127
        %v1791 = vunpack.c.l.b16 %v1128
        %v1792 = vunpack.c.h.b16 %v1128
        %v1793 = vunpack.c.l.b16 %v1129
        %v1794 = vunpack.c.h.b16 %v1129
        %v1795 = vunpack.c.l.b16 %v1130
        %v1796 = vunpack.c.h.b16 %v1130
        %v1797 = vunpack.c.l.b16 %v1131
        %v1798 = vunpack.c.l.b16 %v1132
        %v1799 = vunpack.c.h.b16 %v1132
        %v1800 = vunpack.c.l.b16 %v1133
        %v1801 = vunpack.c.h.b16 %v1133
        %v1802 = vunpack.c.l.b16 %v1134
        %v1803 = vunpack.c.h.b16 %v1134
        %v1804 = vunpack.c.l.b16 %v1135
        %v1805 = vunpack.c.l.b16 %v1136
        %v1806 = vunpack.c.h.b16 %v1136
        %v1807 = vunpack.c.l.b16 %v1137
        %v1808 = vunpack.c.h.b16 %v1137
        %v1809 = vunpack.c.l.b16 %v1138
        %v1810 = vunpack.c.h.b16 %v1138
        %v1811 = vunpack.c.l.b16 %v1139
        %v1812 = vunpack.c.l.b16 %v1140
        %v1813 = vunpack.c.h.b16 %v1140
        %v1814 = vunpack.c.l.b16 %v1141
        %v1815 = vunpack.c.h.b16 %v1141
        %v1816 = vunpack.c.l.b16 %v1142
        %v1817 = vunpack.c.h.b16 %v1142
        %v1818 = vunpack.c.l.b16 %v1143
        %v1819 = vunpack.c.l.b16 %v1144
        %v1820 = vunpack.c.h.b16 %v1144
        %v1821 = vunpack.c.l.b16 %v1145
        %v1822 = vunpack.c.h.b16 %v1145
        %v1823 = vunpack.c.l.b16 %v1146
        %v1824 = vunpack.c.h.b16 %v1146
        %v1825 = vunpack.c.l.b16 %v1147
        %v1826 = vunpack.c.l.b16 %v1148
        %v1827 = vunpack.c.h.b16 %v1148
        %v1828 = vunpack.c.l.b16 %v1149
        %v1829 = vunpack.c.h.b16 %v1149
        %v1830 = vunpack.c.l.b16 %v1150
        %v1831 = vunpack.c.h.b16 %v1150
        %v1832 = vunpack.c.l.b16 %v1151
        %v1833 = vunpack.c.l.b16 %v1152
        %v1834 = vunpack.c.h.b16 %v1152
        %v1835 = vunpack.c.l.b16 %v1153
        %v1836 = vunpack.c.h.b16 %v1153
        %v1837 = vunpack.c.l.b16 %v1154
        %v1838 = vunpack.c.h.b16 %v1154
        %v1839 = vunpack.c.l.b16 %v1155
        %v1840 = vunpack.c.l.b16 %v1156
        %v1841 = vunpack.c.h.b16 %v1156
        %v1842 = vunpack.c.l.b16 %v1157
        %v1843 = vunpack.c.h.b16 %v1157
        %v1844 = vunpack.c.l.b16 %v1158
        %v1845 = vunpack.c.h.b16 %v1158
        %v1846 = vunpack.c.l.b16 %v1159
        %v1847 = vunpack.c.l.b16 %v1160
        %v1848 = vunpack.c.h.b16 %v1160
        %v1849 = vunpack.c.l.b16 %v1161
        %v1850 = vunpack.c.h.b16 %v1161
        %v1851 = vunpack.c.l.b16 %v1162
        %v1852 = vunpack.c.h.b16 %v1162
        %v1853 = vunpack.c.l.b16 %v1163
        %v1854 = vunpack.c.l.b16 %v1164
        %v1855 = vunpack.c.h.b16 %v1164
        %v1856 = vunpack.c.l.b16 %v1165
        %v1857 = vunpack.c.h.b16 %v1165
        %v1858 = vunpack.c.l.b16 %v1166
        %v1859 = vunpack.c.h.b16 %v1166
        %v1860 = vunpack.c.l.b16 %v1167
        %v1861 = vunpack.c.l.b16 %v1168
        %v1862 = vunpack.c.h.b16 %v1168
        %v1863 = vunpack.c.l.b16 %v1169
        %v1864 = vunpack.c.h.b16 %v1169
        %v1865 = vunpack.c.l.b16 %v1170
        %v1866 = vunpack.c.h.b16 %v1170
        %v1867 = vunpack.c.l.b16 %v1171
        %v1868 = vunpack.c.l.b16 %v1172
        %v1869 = vunpack.c.h.b16 %v1172
        %v1870 = vunpack.c.l.b16 %v1173
        %v1871 = vunpack.c.h.b16 %v1173
        %v1872 = vunpack.c.l.b16 %v1174
        %v1873 = vunpack.c.h.b16 %v1174
        %v1874 = vunpack.c.l.b16 %v1175
        %v1875 = vunpack.c.l.b16 %v1176
        %v1876 = vunpack.c.h.b16 %v1176
        %v1877 = vunpack.c.l.b16 %v1177
        %v1878 = vunpack.c.h.b16 %v1177
        %v1879 = vunpack.c.l.b16 %v1178
        %v1880 = vunpack.c.h.b16 %v1178
        %v1881 = vunpack.c.l.b16 %v1179
        %v1882 = vunpack.c.l.b16 %v1180
        %v1883 = vunpack.c.h.b16 %v1180
        %v1884 = vunpack.c.l.b16 %v1181
        %v1885 = vunpack.c.h.b16 %v1181
        %v1886 = vunpack.c.l.b16 %v1182
        %v1887 = vunpack.c.h.b16 %v1182
        %v1888 = vunpack.c.l.b16 %v1183
        %v1889 = vunpack.c.l.b16 %v1184
        %v1890 = vunpack.c.h.b16 %v1184
        %v1891 = vunpack.c.l.b16 %v1185
        %v1892 = vunpack.c.h.b16 %v1185
        %v1893 = vunpack.c.l.b16 %v1186
        %v1894 = vunpack.c.h.b16 %v1186
        %v1895 = vunpack.c.l.b16 %v1187
        %v1896 = vunpack.c.l.b16 %v1188
        %v1897 = vunpack.c.h.b16 %v1188
        %v1898 = vunpack.c.l.b16 %v1189
        %v1899 = vunpack.c.h.b16 %v1189
        %v1900 = vunpack.c.l.b16 %v1190
        %v1901 = vunpack.c.h.b16 %v1190
        %v1902 = vunpack.c.l.b16 %v1191
        %v1903 = vunpack.c.l.b16 %v1192
        %v1904 = vunpack.c.h.b16 %v1192
        %v1905 = vunpack.c.l.b16 %v1193
        %v1906 = vunpack.c.h.b16 %v1193
        %v1907 = vunpack.c.l.b16 %v1194
        %v1908 = vunpack.c.h.b16 %v1194
        %v1909 = vunpack.c.l.b16 %v1195
        %v1910 = vunpack.c.l.b16 %v1196
        %v1911 = vunpack.c.h.b16 %v1196
        %v1912 = vunpack.c.l.b16 %v1197
        %v1913 = vunpack.c.h.b16 %v1197
        %v1914 = vunpack.c.l.b16 %v1198
        %v1915 = vunpack.c.h.b16 %v1198
        %v1916 = vunpack.c.l.b16 %v1199
        %v1917 = vunpack.c.l.b16 %v1200
        %v1918 = vunpack.c.h.b16 %v1200
        %v1919 = vunpack.c.l.b16 %v1201
        %v1920 = vunpack.c.h.b16 %v1201
        %v1921 = vunpack.c.l.b16 %v1202
        %v1922 = vunpack.c.h.b16 %v1202
        %v1923 = vunpack.c.l.b16 %v1203
        %v1924 = vunpack.c.l.b16 %v1204
        %v1925 = vunpack.c.h.b16 %v1204
        %v1926 = vunpack.c.l.b16 %v1205
        %v1927 = vunpack.c.h.b16 %v1205
        %v1928 = vunpack.c.l.b16 %v1206
        %v1929 = vunpack.c.h.b16 %v1206
        %v1930 = vunpack.c.l.b16 %v1207
        %v1931 = vunpack.c.l.b16 %v1208
        %v1932 = vunpack.c.h.b16 %v1208
        %v1933 = vunpack.c.l.b16 %v1209
        %v1934 = vunpack.c.h.b16 %v1209
        %v1935 = vunpack.c.l.b16 %v1210
        %v1936 = vunpack.c.h.b16 %v1210
        %v1937 = vunpack.c.l.b16 %v1211
        %v1938 = vunpack.c.l.b16 %v1212
        %v1939 = vunpack.c.h.b16 %v1212
        %v1940 = vunpack.c.l.b16 %v1213
        %v1941 = vunpack.c.h.b16 %v1213
        %v1942 = vunpack.c.l.b16 %v1214
        %v1943 = vunpack.c.h.b16 %v1214
        %v1944 = vunpack.c.l.b16 %v1215
        %v1945 = vunpack.c.l.b16 %v1216
        %v1946 = vunpack.c.h.b16 %v1216
        %v1947 = vunpack.c.l.b16 %v1217
        %v1948 = vunpack.c.h.b16 %v1217
        %v1949 = vunpack.c.l.b16 %v1218
        %v1950 = vunpack.c.h.b16 %v1218
        %v1951 = vunpack.c.l.b16 %v1219
        %v1952 = vunpack.c.l.b16 %v1220
        %v1953 = vunpack.c.h.b16 %v1220
        %v1954 = vunpack.c.l.b16 %v1221
        %v1955 = vunpack.c.h.b16 %v1221
        %v1956 = vunpack.c.l.b16 %v1222
        %v1957 = vunpack.c.h.b16 %v1222
        %v1958 = vunpack.c.l.b16 %v1223
        %v1959 = vunpack.c.l.b16 %v1224
        %v1960 = vunpack.c.h.b16 %v1224
        %v1961 = vunpack.c.l.b16 %v1225
        %v1962 = vunpack.c.h.b16 %v1225
        %v1963 = vunpack.c.l.b16 %v1226
        %v1964 = vunpack.c.h.b16 %v1226
        %v1965 = vunpack.c.l.b16 %v1227
        %v1966 = vunpack.c.l.b16 %v1228
        %v1967 = vunpack.c.h.b16 %v1228
        %v1968 = vunpack.c.l.b16 %v1229
        %v1969 = vunpack.c.h.b16 %v1229
        %v1970 = vunpack.c.l.b16 %v1230
        %v1971 = vunpack.c.h.b16 %v1230
        %v1972 = vunpack.c.l.b16 %v1231
        %v1973 = vpack.c.b16 %v1532, %v1525
        %v1974 = vpack.c.b16 %v1533, %v1526
        %v1975 = vpack.c.b16 %v1534, %v1527
        %v1976 = vpack.c.b16 %v1535, %v1528
        %v1977 = vpack.c.b16 %v1536, %v1529
        %v1978 = vpack.c.b16 %v1537, %v1530
        %v1979 = vpack.c.b16 %v1538, %v1531
        %v1980 = vpack.c.b16 %v1546, %v1539
        %v1981 = vpack.c.b16 %v1547, %v1540
        %v1982 = vpack.c.b16 %v1548, %v1541
        %v1983 = vpack.c.b16 %v1549, %v1542
        %v1984 = vpack.c.b16 %v1550, %v1543
        %v1985 = vpack.c.b16 %v1551, %v1544
        %v1986 = vpack.c.b16 %v1552, %v1545
        %v1987 = vpack.c.b16 %v1560, %v1553
        %v1988 = vpack.c.b16 %v1561, %v1554
        %v1989 = vpack.c.b16 %v1562, %v1555
        %v1990 = vpack.c.b16 %v1563, %v1556
        %v1991 = vpack.c.b16 %v1564, %v1557
        %v1992 = vpack.c.b16 %v1565, %v1558
        %v1993 = vpack.c.b16 %v1566, %v1559
        %v1994 = vpack.c.b16 %v1574, %v1567
        %v1995 = vpack.c.b16 %v1575, %v1568
        %v1996 = vpack.c.b16 %v1576, %v1569
        %v1997 = vpack.c.b16 %v1577, %v1570
        %v1998 = vpack.c.b16 %v1578, %v1571
        %v1999 = vpack.c.b16 %v1579, %v1572
        %v2000 = vpack.c.b16 %v1580, %v1573
        %v2001 = vpack.c.b16 %v1588, %v1581
        %v2002 = vpack.c.b16 %v1589, %v1582
        %v2003 = vpack.c.b16 %v1590, %v1583
        %v2004 = vpack.c.b16 %v1591, %v1584
        %v2005 = vpack.c.b16 %v1592, %v1585
        %v2006 = vpack.c.b16 %v1593, %v1586
        %v2007 = vpack.c.b16 %v1594, %v1587
        %v2008 = vpack.c.b16 %v1602, %v1595
        %v2009 = vpack.c.b16 %v1603, %v1596
        %v2010 = vpack.c.b16 %v1604, %v1597
        %v2011 = vpack.c.b16 %v1605, %v1598
        %v2012 = vpack.c.b16 %v1606, %v1599
        %v2013 = vpack.c.b16 %v1607, %v1600
        %v2014 = vpack.c.b16 %v1608, %v1601
        %v2015 = vpack.c.b16 %v1616, %v1609
        %v2016 = vpack.c.b16 %v1617, %v1610
        %v2017 = vpack.c.b16 %v1618, %v1611
        %v2018 = vpack.c.b16 %v1619, %v1612
        %v2019 = vpack.c.b16 %v1620, %v1613
        %v2020 = vpack.c.b16 %v1621, %v1614
        %v2021 = vpack.c.b16 %v1622, %v1615
        %v2022 = vpack.c.b16 %v1630, %v1623
        %v2023 = vpack.c.b16 %v1631, %v1624
        %v2024 = vpack.c.b16 %v1632, %v1625
        %v2025 = vpack.c.b16 %v1633, %v1626
        %v2026 = vpack.c.b16 %v1634, %v1627
        %v2027 = vpack.c.b16 %v1635, %v1628
        %v2028 = vpack.c.b16 %v1636, %v1629
        %v2029 = vpack.c.b16 %v1644, %v1637
        %v2030 = vpack.c.b16 %v1645, %v1638
        %v2031 = vpack.c.b16 %v1646, %v1639
        %v2032 = vpack.c.b16 %v1647, %v1640
        %v2033 = vpack.c.b16 %v1648, %v1641
        %v2034 = vpack.c.b16 %v1649, %v1642
        %v2035 = vpack.c.b16 %v1650, %v1643
        %v2036 = vpack.c.b16 %v1658, %v1651
        %v2037 = vpack.c.b16 %v1659, %v1652
        %v2038 = vpack.c.b16 %v1660, %v1653
        %v2039 = vpack.c.b16 %v1661, %v1654
        %v2040 = vpack.c.b16 %v1662, %v1655
        %v2041 = vpack.c.b16 %v1663, %v1656
        %v2042 = vpack.c.b16 %v1664, %v1657
        %v2043 = vpack.c.b16 %v1672, %v1665
        %v2044 = vpack.c.b16 %v1673, %v1666
        %v2045 = vpack.c.b16 %v1674, %v1667
        %v2046 = vpack.c.b16 %v1675, %v1668
        %v2047 = vpack.c.b16 %v1676, %v1669
        %v2048 = vpack.c.b16 %v1677, %v1670
        %v2049 = vpack.c.b16 %v1678, %v1671
        %v2050 = vpack.c.b16 %v1686, %v1679
        %v2051 = vpack.c.b16 %v1687, %v1680
        %v2052 = vpack.c.b16 %v1688, %v1681
        %v2053 = vpack.c.b16 %v1689, %v1682
        %v2054 = vpack.c.b16 %v1690, %v1683
        %v2055 = vpack.c.b16 %v1691, %v1684
        %v2056 = vpack.c.b16 %v1692, %v1685
        %v2057 = vpack.c.b16 %v1700, %v1693
        %v2058 = vpack.c.b16 %v1701, %v1694
        %v2059 = vpack.c.b16 %v1702, %v1695
        %v2060 = vpack.c.b16 %v1703, %v1696
        %v2061 = vpack.c.b16 %v1704, %v1697
        %v2062 = vpack.c.b16 %v1705, %v1698
        %v2063 = vpack.c.b16 %v1706, %v1699
        %v2064 = vpack.c.b16 %v1714, %v1707
        %v2065 = vpack.c.b16 %v1715, %v1708
        %v2066 = vpack.c.b16 %v1716, %v1709
        %v2067 = vpack.c.b16 %v1717, %v1710
        %v2068 = vpack.c.b16 %v1718, %v1711
        %v2069 = vpack.c.b16 %v1719, %v1712
        %v2070 = vpack.c.b16 %v1720, %v1713
        %v2071 = vpack.c.b16 %v1728, %v1721
        %v2072 = vpack.c.b16 %v1729, %v1722
        %v2073 = vpack.c.b16 %v1730, %v1723
        %v2074 = vpack.c.b16 %v1731, %v1724
        %v2075 = vpack.c.b16 %v1732, %v1725
        %v2076 = vpack.c.b16 %v1733, %v1726
        %v2077 = vpack.c.b16 %v1734, %v1727
        %v2078 = vpack.c.b16 %v1742, %v1735
        %v2079 = vpack.c.b16 %v1743, %v1736
        %v2080 = vpack.c.b16 %v1744, %v1737
        %v2081 = vpack.c.b16 %v1745, %v1738
        %v2082 = vpack.c.b16 %v1746, %v1739
        %v2083 = vpack.c.b16 %v1747, %v1740
        %v2084 = vpack.c.b16 %v1748, %v1741
        %v2085 = vpack.c.b16 %v1756, %v1749
        %v2086 = vpack.c.b16 %v1757, %v1750
        %v2087 = vpack.c.b16 %v1758, %v1751
        %v2088 = vpack.c.b16 %v1759, %v1752
        %v2089 = vpack.c.b16 %v1760, %v1753
        %v2090 = vpack.c.b16 %v1761, %v1754
        %v2091 = vpack.c.b16 %v1762, %v1755
        %v2092 = vpack.c.b16 %v1770, %v1763
        %v2093 = vpack.c.b16 %v1771, %v1764
        %v2094 = vpack.c.b16 %v1772, %v1765
        %v2095 = vpack.c.b16 %v1773, %v1766
        %v2096 = vpack.c.b16 %v1774, %v1767
        %v2097 = vpack.c.b16 %v1775, %v1768
        %v2098 = vpack.c.b16 %v1776, %v1769
        %v2099 = vpack.c.b16 %v1784, %v1777
        %v2100 = vpack.c.b16 %v1785, %v1778
        %v2101 = vpack.c.b16 %v1786, %v1779
        %v2102 = vpack.c.b16 %v1787, %v1780
        %v2103 = vpack.c.b16 %v1788, %v1781
        %v2104 = vpack.c.b16 %v1789, %v1782
        %v2105 = vpack.c.b16 %v1790, %v1783
        %v2106 = vpack.c.b16 %v1798, %v1791
        %v2107 = vpack.c.b16 %v1799, %v1792
        %v2108 = vpack.c.b16 %v1800, %v1793
        %v2109 = vpack.c.b16 %v1801, %v1794
        %v2110 = vpack.c.b16 %v1802, %v1795
        %v2111 = vpack.c.b16 %v1803, %v1796
        %v2112 = vpack.c.b16 %v1804, %v1797
        %v2113 = vpack.c.b16 %v1812, %v1805
        %v2114 = vpack.c.b16 %v1813, %v1806
        %v2115 = vpack.c.b16 %v1814, %v1807
        %v2116 = vpack.c.b16 %v1815, %v1808
        %v2117 = vpack.c.b16 %v1816, %v1809
        %v2118 = vpack.c.b16 %v1817, %v1810
        %v2119 = vpack.c.b16 %v1818, %v1811
        %v2120 = vpack.c.b16 %v1826, %v1819
        %v2121 = vpack.c.b16 %v1827, %v1820
        %v2122 = vpack.c.b16 %v1828, %v1821
        %v2123 = vpack.c.b16 %v1829, %v1822
        %v2124 = vpack.c.b16 %v1830, %v1823
        %v2125 = vpack.c.b16 %v1831, %v1824
        %v2126 = vpack.c.b16 %v1832, %v1825
        %v2127 = vpack.c.b16 %v1840, %v1833
        %v2128 = vpack.c.b16 %v1841, %v1834
        %v2129 = vpack.c.b16 %v1842, %v1835
        %v2130 = vpack.c.b16 %v1843, %v1836
        %v2131 = vpack.c.b16 %v1844, %v1837
        %v2132 = vpack.c.b16 %v1845, %v1838
        %v2133 = vpack.c.b16 %v1846, %v1839
        %v2134 = vpack.c.b16 %v1854, %v1847
        %v2135 = vpack.c.b16 %v1855, %v1848
        %v2136 = vpack.c.b16 %v1856, %v1849
        %v2137 = vpack.c.b16 %v1857, %v1850
        %v2138 = vpack.c.b16 %v1858, %v1851
        %v2139 = vpack.c.b16 %v1859, %v1852
        %v2140 = vpack.c.b16 %v1860, %v1853
        %v2141 = vpack.c.b16 %v1868, %v1861
        %v2142 = vpack.c.b16 %v1869, %v1862
        %v2143 = vpack.c.b16 %v1870, %v1863
        %v2144 = vpack.c.b16 %v1871, %v1864
        %v2145 = vpack.c.b16 %v1872, %v1865
        %v2146 = vpack.c.b16 %v1873, %v1866
        %v2147 = vpack.c.b16 %v1874, %v1867
        %v2148 = vpack.c.b16 %v1882, %v1875
        %v2149 = vpack.c.b16 %v1883, %v1876
        %v2150 = vpack.c.b16 %v1884, %v1877
        %v2151 = vpack.c.b16 %v1885, %v1878
        %v2152 = vpack.c.b16 %v1886, %v1879
        %v2153 = vpack.c.b16 %v1887, %v1880
        %v2154 = vpack.c.b16 %v1888, %v1881
        %v2155 = vpack.c.b16 %v1896, %v1889
        %v2156 = vpack.c.b16 %v1897, %v1890
        %v2157 = vpack.c.b16 %v1898, %v1891
        %v2158 = vpack.c.b16 %v1899, %v1892
        %v2159 = vpack.c.b16 %v1900, %v1893
        %v2160 = vpack.c.b16 %v1901, %v1894
        %v2161 = vpack.c.b16 %v1902, %v1895
        %v2162 = vpack.c.b16 %v1910, %v1903
        %v2163 = vpack.c.b16 %v1911, %v1904
        %v2164 = vpack.c.b16 %v1912, %v1905
        %v2165 = vpack.c.b16 %v1913, %v1906
        %v2166 = vpack.c.b16 %v1914, %v1907
        %v2167 = vpack.c.b16 %v1915, %v1908
        %v2168 = vpack.c.b16 %v1916, %v1909
        %v2169 = vpack.c.b16 %v1924, %v1917
        %v2170 = vpack.c.b16 %v1925, %v1918
        %v2171 = vpack.c.b16 %v1926, %v1919
        %v2172 = vpack.c.b16 %v1927, %v1920
        %v2173 = vpack.c.b16 %v1928, %v1921
        %v2174 = vpack.c.b16 %v1929, %v1922
        %v2175 = vpack.c.b16 %v1930, %v1923
        %v2176 = vpack.c.b16 %v1938, %v1931
        %v2177 = vpack.c.b16 %v1939, %v1932
        %v2178 = vpack.c.b16 %v1940, %v1933
        %v2179 = vpack.c.b16 %v1941, %v1934
        %v2180 = vpack.c.b16 %v1942, %v1935
        %v2181 = vpack.c.b16 %v1943, %v1936
        %v2182 = vpack.c.b16 %v1944, %v1937
        %v2183 = vpack.c.b16 %v1952, %v1945
        %v2184 = vpack.c.b16 %v1953, %v1946
        %v2185 = vpack.c.b16 %v1954, %v1947
        %v2186 = vpack.c.b16 %v1955, %v1948
        %v2187 = vpack.c.b16 %v1956, %v1949
        %v2188 = vpack.c.b16 %v1957, %v1950
        %v2189 = vpack.c.b16 %v1958, %v1951
        %v2190 = vpack.c.b16 %v1966, %v1959
        %v2191 = vpack.c.b16 %v1967, %v1960
        %v2192 = vpack.c.b16 %v1968, %v1961
        %v2193 = vpack.c.b16 %v1969, %v1962
        %v2194 = vpack.c.b16 %v1970, %v1963
        %v2195 = vpack.c.b16 %v1971, %v1964
        %v2196 = vpack.c.b16 %v1972, %v1965
        %2421 = vmatprep.subr.bf16.mxu0 %v2023
        %2422 = vmatpush1.bf16.msra.mxu0 %v2022
        %2423 = vmatprep.subr.bf16.mxu0 %v2016
        %2424 = vmatpush1.bf16.msra.mxu0 %v2015
        %2425 = vmatprep.subr.bf16.mxu0 %v2009
        %2426 = vmatpush1.bf16.msra.mxu0 %v2008
        %2427 = vmatprep.subr.bf16.mxu0 %v2002
        %2428 = vmatpush1.bf16.msra.mxu0 %v2001
        %2429 = vmatprep.subr.bf16.mxu0 %v1995
        %2430 = vmatpush1.bf16.msra.mxu0 %v1994
        %2431 = vmatprep.subr.bf16.mxu0 %v1988
        %2432 = vmatpush1.bf16.msra.mxu0 %v1987
        %2433 = vmatprep.subr.bf16.mxu0 %v1981
        %2434 = vmatpush1.bf16.msra.mxu0 %v1980
        %2435 = vmatprep.subr.bf16.mxu0 %v1974
        %2436 = vmatpush1.bf16.msra.mxu0 %v1973
        %2437 = vmatprep.subr.bf16.mxu0 %v2079
        %2438 = vmatpush2.bf16.msra.mxu0 %v2078
        %2439 = vmatprep.subr.bf16.mxu0 %v2072
        %2440 = vmatpush2.bf16.msra.mxu0 %v2071
        %2441 = vmatprep.subr.bf16.mxu0 %v2065
        %2442 = vmatpush2.bf16.msra.mxu0 %v2064
        %2443 = vmatprep.subr.bf16.mxu0 %v2058
        %2444 = vmatpush2.bf16.msra.mxu0 %v2057
        %2445 = vmatprep.subr.bf16.mxu0 %v2051
        %2446 = vmatpush2.bf16.msra.mxu0 %v2050
        %2447 = vmatprep.subr.bf16.mxu0 %v2044
        %2448 = vmatpush2.bf16.msra.mxu0 %v2043
        %2449 = vmatprep.subr.bf16.mxu0 %v2037
        %2450 = vmatpush2.bf16.msra.mxu0 %v2036
        %2451 = vmatprep.subr.bf16.mxu0 %v2030
        %2452 = vmatpush2.bf16.msra.mxu0 %v2029
        %2453 = vmatprep.mubr.bf16.mxu0 %v973
        %2454 = vmatmul.mubr.bf16.gmra.mxu0 %v972
        %v2455 = vpop.f32.mrf.mxu0
        %v2456 = vadd.f32 %v1237, %v2455
        %v2457 = vpop.f32.mrf.mxu0
        %v2458 = vadd.f32 %v1241, %v2457
        %v2459 = vpop.f32.mrf.mxu0
        %v2460 = vadd.f32 %v1237, %v2459
        %v2461 = vpop.f32.mrf.mxu0
        %v2462 = vadd.f32 %v1241, %v2461
        %2463 = vdwg.mxu0
        %2464 = vmatprep.subr.bf16.mxu0 %v2135
        %2465 = vmatpush1.bf16.msra.mxu0 %v2134
        %2466 = vmatprep.subr.bf16.mxu0 %v2128
        %2467 = vmatpush1.bf16.msra.mxu0 %v2127
        %2468 = vmatprep.subr.bf16.mxu0 %v2121
        %2469 = vmatpush1.bf16.msra.mxu0 %v2120
        %2470 = vmatprep.subr.bf16.mxu0 %v2114
        %2471 = vmatpush1.bf16.msra.mxu0 %v2113
        %2472 = vmatprep.subr.bf16.mxu0 %v2107
        %2473 = vmatpush1.bf16.msra.mxu0 %v2106
        %2474 = vmatprep.subr.bf16.mxu0 %v2100
        %2475 = vmatpush1.bf16.msra.mxu0 %v2099
        %2476 = vmatprep.subr.bf16.mxu0 %v2093
        %2477 = vmatpush1.bf16.msra.mxu0 %v2092
        %2478 = vmatprep.subr.bf16.mxu0 %v2086
        %2479 = vmatpush1.bf16.msra.mxu0 %v2085
        %2480 = vmatprep.subr.bf16.mxu0 %v2191
        %2481 = vmatpush2.bf16.msra.mxu0 %v2190
        %2482 = vmatprep.subr.bf16.mxu0 %v2184
        %2483 = vmatpush2.bf16.msra.mxu0 %v2183
        %2484 = vmatprep.subr.bf16.mxu0 %v2177
        %2485 = vmatpush2.bf16.msra.mxu0 %v2176
        %2486 = vmatprep.subr.bf16.mxu0 %v2170
        %2487 = vmatpush2.bf16.msra.mxu0 %v2169
        %2488 = vmatprep.subr.bf16.mxu0 %v2163
        %2489 = vmatpush2.bf16.msra.mxu0 %v2162
        %2490 = vmatprep.subr.bf16.mxu0 %v2156
        %2491 = vmatpush2.bf16.msra.mxu0 %v2155
        %2492 = vmatprep.subr.bf16.mxu0 %v2149
        %2493 = vmatpush2.bf16.msra.mxu0 %v2148
        %2494 = vmatprep.subr.bf16.mxu0 %v2142
        %2495 = vmatpush2.bf16.msra.mxu0 %v2141
        %2496 = vmatprep.mubr.bf16.mxu0 %v975
        %2497 = vmatmul.mubr.bf16.gmra.mxu0 %v974
        %v2498 = vpop.f32.mrf.mxu0
        %v2499 = vadd.f32 %v2456, %v2498
        %v2500 = vpop.f32.mrf.mxu0
        %v2501 = vadd.f32 %v2458, %v2500
        %v2502 = vpop.f32.mrf.mxu0
        %v2503 = vadd.f32 %v2460, %v2502
        %v2504 = vpop.f32.mrf.mxu0
        %v2505 = vadd.f32 %v2462, %v2504
        %2506 = vdwg.mxu0
        %2507 = vmatprep.subr.bf16.mxu0 %v2025
        %2508 = vmatpush1.bf16.msra.mxu0 %v2024
        %2509 = vmatprep.subr.bf16.mxu0 %v2018
        %2510 = vmatpush1.bf16.msra.mxu0 %v2017
        %2511 = vmatprep.subr.bf16.mxu0 %v2011
        %2512 = vmatpush1.bf16.msra.mxu0 %v2010
        %2513 = vmatprep.subr.bf16.mxu0 %v2004
        %2514 = vmatpush1.bf16.msra.mxu0 %v2003
        %2515 = vmatprep.subr.bf16.mxu0 %v1997
        %2516 = vmatpush1.bf16.msra.mxu0 %v1996
        %2517 = vmatprep.subr.bf16.mxu0 %v1990
        %2518 = vmatpush1.bf16.msra.mxu0 %v1989
        %2519 = vmatprep.subr.bf16.mxu0 %v1983
        %2520 = vmatpush1.bf16.msra.mxu0 %v1982
        %2521 = vmatprep.subr.bf16.mxu0 %v1976
        %2522 = vmatpush1.bf16.msra.mxu0 %v1975
        %2523 = vmatprep.subr.bf16.mxu0 %v2081
        %2524 = vmatpush2.bf16.msra.mxu0 %v2080
        %2525 = vmatprep.subr.bf16.mxu0 %v2074
        %2526 = vmatpush2.bf16.msra.mxu0 %v2073
        %2527 = vmatprep.subr.bf16.mxu0 %v2067
        %2528 = vmatpush2.bf16.msra.mxu0 %v2066
        %2529 = vmatprep.subr.bf16.mxu0 %v2060
        %2530 = vmatpush2.bf16.msra.mxu0 %v2059
        %2531 = vmatprep.subr.bf16.mxu0 %v2053
        %2532 = vmatpush2.bf16.msra.mxu0 %v2052
        %2533 = vmatprep.subr.bf16.mxu0 %v2046
        %2534 = vmatpush2.bf16.msra.mxu0 %v2045
        %2535 = vmatprep.subr.bf16.mxu0 %v2039
        %2536 = vmatpush2.bf16.msra.mxu0 %v2038
        %2537 = vmatprep.subr.bf16.mxu0 %v2032
        %2538 = vmatpush2.bf16.msra.mxu0 %v2031
        %2539 = vmatprep.mubr.bf16.mxu0 %v973
        %2540 = vmatmul.mubr.bf16.gmra.mxu0 %v972
        %v2541 = vpop.f32.mrf.mxu0
        %v2542 = vadd.f32 %v1245, %v2541
        %v2543 = vpop.f32.mrf.mxu0
        %v2544 = vadd.f32 %v1249, %v2543
        %v2545 = vpop.f32.mrf.mxu0
        %v2546 = vadd.f32 %v1245, %v2545
        %v2547 = vpop.f32.mrf.mxu0
        %v2548 = vadd.f32 %v1249, %v2547
        %2549 = vdwg.mxu0
        %2550 = vmatprep.subr.bf16.mxu0 %v2137
        %2551 = vmatpush1.bf16.msra.mxu0 %v2136
        %2552 = vmatprep.subr.bf16.mxu0 %v2130
        %2553 = vmatpush1.bf16.msra.mxu0 %v2129
        %2554 = vmatprep.subr.bf16.mxu0 %v2123
        %2555 = vmatpush1.bf16.msra.mxu0 %v2122
        %2556 = vmatprep.subr.bf16.mxu0 %v2116
        %2557 = vmatpush1.bf16.msra.mxu0 %v2115
        %2558 = vmatprep.subr.bf16.mxu0 %v2109
        %2559 = vmatpush1.bf16.msra.mxu0 %v2108
        %2560 = vmatprep.subr.bf16.mxu0 %v2102
        %2561 = vmatpush1.bf16.msra.mxu0 %v2101
        %2562 = vmatprep.subr.bf16.mxu0 %v2095
        %2563 = vmatpush1.bf16.msra.mxu0 %v2094
        %2564 = vmatprep.subr.bf16.mxu0 %v2088
        %2565 = vmatpush1.bf16.msra.mxu0 %v2087
        %2566 = vmatprep.subr.bf16.mxu0 %v2193
        %2567 = vmatpush2.bf16.msra.mxu0 %v2192
        %2568 = vmatprep.subr.bf16.mxu0 %v2186
        %2569 = vmatpush2.bf16.msra.mxu0 %v2185
        %2570 = vmatprep.subr.bf16.mxu0 %v2179
        %2571 = vmatpush2.bf16.msra.mxu0 %v2178
        %2572 = vmatprep.subr.bf16.mxu0 %v2172
        %2573 = vmatpush2.bf16.msra.mxu0 %v2171
        %2574 = vmatprep.subr.bf16.mxu0 %v2165
        %2575 = vmatpush2.bf16.msra.mxu0 %v2164
        %2576 = vmatprep.subr.bf16.mxu0 %v2158
        %2577 = vmatpush2.bf16.msra.mxu0 %v2157
        %2578 = vmatprep.subr.bf16.mxu0 %v2151
        %2579 = vmatpush2.bf16.msra.mxu0 %v2150
        %2580 = vmatprep.subr.bf16.mxu0 %v2144
        %2581 = vmatpush2.bf16.msra.mxu0 %v2143
        %2582 = vmatprep.mubr.bf16.mxu0 %v975
        %2583 = vmatmul.mubr.bf16.gmra.mxu0 %v974
        %v2584 = vpop.f32.mrf.mxu0
        %v2585 = vadd.f32 %v2542, %v2584
        %v2586 = vpop.f32.mrf.mxu0
        %v2587 = vadd.f32 %v2544, %v2586
        %v2588 = vpop.f32.mrf.mxu0
        %v2589 = vadd.f32 %v2546, %v2588
        %v2590 = vpop.f32.mrf.mxu0
        %v2591 = vadd.f32 %v2548, %v2590
        %2592 = vdwg.mxu0
        %2593 = vmatprep.subr.bf16.mxu0 %v2027
        %2594 = vmatpush1.bf16.msra.mxu0 %v2026
        %2595 = vmatprep.subr.bf16.mxu0 %v2020
        %2596 = vmatpush1.bf16.msra.mxu0 %v2019
        %2597 = vmatprep.subr.bf16.mxu0 %v2013
        %2598 = vmatpush1.bf16.msra.mxu0 %v2012
        %2599 = vmatprep.subr.bf16.mxu0 %v2006
        %2600 = vmatpush1.bf16.msra.mxu0 %v2005
        %2601 = vmatprep.subr.bf16.mxu0 %v1999
        %2602 = vmatpush1.bf16.msra.mxu0 %v1998
        %2603 = vmatprep.subr.bf16.mxu0 %v1992
        %2604 = vmatpush1.bf16.msra.mxu0 %v1991
        %2605 = vmatprep.subr.bf16.mxu0 %v1985
        %2606 = vmatpush1.bf16.msra.mxu0 %v1984
        %2607 = vmatprep.subr.bf16.mxu0 %v1978
        %2608 = vmatpush1.bf16.msra.mxu0 %v1977
        %2609 = vmatprep.subr.bf16.mxu0 %v2083
        %2610 = vmatpush2.bf16.msra.mxu0 %v2082
        %2611 = vmatprep.subr.bf16.mxu0 %v2076
        %2612 = vmatpush2.bf16.msra.mxu0 %v2075
        %2613 = vmatprep.subr.bf16.mxu0 %v2069
        %2614 = vmatpush2.bf16.msra.mxu0 %v2068
        %2615 = vmatprep.subr.bf16.mxu0 %v2062
        %2616 = vmatpush2.bf16.msra.mxu0 %v2061
        %2617 = vmatprep.subr.bf16.mxu0 %v2055
        %2618 = vmatpush2.bf16.msra.mxu0 %v2054
        %2619 = vmatprep.subr.bf16.mxu0 %v2048
        %2620 = vmatpush2.bf16.msra.mxu0 %v2047
        %2621 = vmatprep.subr.bf16.mxu0 %v2041
        %2622 = vmatpush2.bf16.msra.mxu0 %v2040
        %2623 = vmatprep.subr.bf16.mxu0 %v2034
        %2624 = vmatpush2.bf16.msra.mxu0 %v2033
        %2625 = vmatprep.mubr.bf16.mxu0 %v973
        %2626 = vmatmul.mubr.bf16.gmra.mxu0 %v972
        %v2627 = vpop.f32.mrf.mxu0
        %v2628 = vadd.f32 %v1253, %v2627
        %v2629 = vpop.f32.mrf.mxu0
        %v2630 = vadd.f32 %v1257, %v2629
        %v2631 = vpop.f32.mrf.mxu0
        %v2632 = vadd.f32 %v1253, %v2631
        %v2633 = vpop.f32.mrf.mxu0
        %v2634 = vadd.f32 %v1257, %v2633
        %2635 = vdwg.mxu0
        %2636 = vmatprep.subr.bf16.mxu0 %v2139
        %2637 = vmatpush1.bf16.msra.mxu0 %v2138
        %2638 = vmatprep.subr.bf16.mxu0 %v2132
        %2639 = vmatpush1.bf16.msra.mxu0 %v2131
        %2640 = vmatprep.subr.bf16.mxu0 %v2125
        %2641 = vmatpush1.bf16.msra.mxu0 %v2124
        %2642 = vmatprep.subr.bf16.mxu0 %v2118
        %2643 = vmatpush1.bf16.msra.mxu0 %v2117
        %2644 = vmatprep.subr.bf16.mxu0 %v2111
        %2645 = vmatpush1.bf16.msra.mxu0 %v2110
        %2646 = vmatprep.subr.bf16.mxu0 %v2104
        %2647 = vmatpush1.bf16.msra.mxu0 %v2103
        %2648 = vmatprep.subr.bf16.mxu0 %v2097
        %2649 = vmatpush1.bf16.msra.mxu0 %v2096
        %2650 = vmatprep.subr.bf16.mxu0 %v2090
        %2651 = vmatpush1.bf16.msra.mxu0 %v2089
        %2652 = vmatprep.subr.bf16.mxu0 %v2195
        %2653 = vmatpush2.bf16.msra.mxu0 %v2194
        %2654 = vmatprep.subr.bf16.mxu0 %v2188
        %2655 = vmatpush2.bf16.msra.mxu0 %v2187
        %2656 = vmatprep.subr.bf16.mxu0 %v2181
        %2657 = vmatpush2.bf16.msra.mxu0 %v2180
        %2658 = vmatprep.subr.bf16.mxu0 %v2174
        %2659 = vmatpush2.bf16.msra.mxu0 %v2173
        %2660 = vmatprep.subr.bf16.mxu0 %v2167
        %2661 = vmatpush2.bf16.msra.mxu0 %v2166
        %2662 = vmatprep.subr.bf16.mxu0 %v2160
        %2663 = vmatpush2.bf16.msra.mxu0 %v2159
        %2664 = vmatprep.subr.bf16.mxu0 %v2153
        %2665 = vmatpush2.bf16.msra.mxu0 %v2152
        %2666 = vmatprep.subr.bf16.mxu0 %v2146
        %2667 = vmatpush2.bf16.msra.mxu0 %v2145
        %2668 = vmatprep.mubr.bf16.mxu0 %v975
        %2669 = vmatmul.mubr.bf16.gmra.mxu0 %v974
        %v2670 = vpop.f32.mrf.mxu0
        %v2671 = vadd.f32 %v2628, %v2670
        %v2672 = vpop.f32.mrf.mxu0
        %v2673 = vadd.f32 %v2630, %v2672
        %v2674 = vpop.f32.mrf.mxu0
        %v2675 = vadd.f32 %v2632, %v2674
        %v2676 = vpop.f32.mrf.mxu0
        %v2677 = vadd.f32 %v2634, %v2676
        %2678 = vdwg.mxu0
        %2679 = vmatprep.subr.bf16.mxu0 0
        %2680 = vmatpush1.bf16.msra.mxu0 %v2028
        %2681 = vmatprep.subr.bf16.mxu0 0
        %2682 = vmatpush1.bf16.msra.mxu0 %v2021
        %2683 = vmatprep.subr.bf16.mxu0 0
        %2684 = vmatpush1.bf16.msra.mxu0 %v2014
        %2685 = vmatprep.subr.bf16.mxu0 0
        %2686 = vmatpush1.bf16.msra.mxu0 %v2007
        %2687 = vmatprep.subr.bf16.mxu0 0
        %2688 = vmatpush1.bf16.msra.mxu0 %v2000
        %2689 = vmatprep.subr.bf16.mxu0 0
        %2690 = vmatpush1.bf16.msra.mxu0 %v1993
        %2691 = vmatprep.subr.bf16.mxu0 0
        %2692 = vmatpush1.bf16.msra.mxu0 %v1986
        %2693 = vmatprep.subr.bf16.mxu0 0
        %2694 = vmatpush1.bf16.msra.mxu0 %v1979
        %2695 = vmatprep.subr.bf16.mxu0 0
        %2696 = vmatpush2.bf16.msra.mxu0 %v2084
        %2697 = vmatprep.subr.bf16.mxu0 0
        %2698 = vmatpush2.bf16.msra.mxu0 %v2077
        %2699 = vmatprep.subr.bf16.mxu0 0
        %2700 = vmatpush2.bf16.msra.mxu0 %v2070
        %2701 = vmatprep.subr.bf16.mxu0 0
        %2702 = vmatpush2.bf16.msra.mxu0 %v2063
        %2703 = vmatprep.subr.bf16.mxu0 0
        %2704 = vmatpush2.bf16.msra.mxu0 %v2056
        %2705 = vmatprep.subr.bf16.mxu0 0
        %2706 = vmatpush2.bf16.msra.mxu0 %v2049
        %2707 = vmatprep.subr.bf16.mxu0 0
        %2708 = vmatpush2.bf16.msra.mxu0 %v2042
        %2709 = vmatprep.subr.bf16.mxu0 0
        %2710 = vmatpush2.bf16.msra.mxu0 %v2035
        %2711 = vmatprep.mubr.bf16.mxu0 %v973
        %2712 = vmatmul.mubr.bf16.gmra.mxu0 %v972
        %v2713 = vpop.f32.mrf.mxu0
        %v2714 = vadd.f32 %v1261, %v2713
        %v2715 = vpop.f32.mrf.mxu0
        %v2716 = vpop.f32.mrf.mxu0
        %v2717 = vadd.f32 %v1261, %v2716
        %v2718 = vpop.f32.mrf.mxu0
        %2719 = vdwg.mxu0
        %2720 = vmatprep.subr.bf16.mxu0 0
        %2721 = vmatpush1.bf16.msra.mxu0 %v2140
        %2722 = vmatprep.subr.bf16.mxu0 0
        %2723 = vmatpush1.bf16.msra.mxu0 %v2133
        %2724 = vmatprep.subr.bf16.mxu0 0
        %2725 = vmatpush1.bf16.msra.mxu0 %v2126
        %2726 = vmatprep.subr.bf16.mxu0 0
        %2727 = vmatpush1.bf16.msra.mxu0 %v2119
        %2728 = vmatprep.subr.bf16.mxu0 0
        %2729 = vmatpush1.bf16.msra.mxu0 %v2112
        %2730 = vmatprep.subr.bf16.mxu0 0
        %2731 = vmatpush1.bf16.msra.mxu0 %v2105
        %2732 = vmatprep.subr.bf16.mxu0 0
        %2733 = vmatpush1.bf16.msra.mxu0 %v2098
        %2734 = vmatprep.subr.bf16.mxu0 0
        %2735 = vmatpush1.bf16.msra.mxu0 %v2091
        %2736 = vmatprep.subr.bf16.mxu0 0
        %2737 = vmatpush2.bf16.msra.mxu0 %v2196
        %2738 = vmatprep.subr.bf16.mxu0 0
        %2739 = vmatpush2.bf16.msra.mxu0 %v2189
        %2740 = vmatprep.subr.bf16.mxu0 0
        %2741 = vmatpush2.bf16.msra.mxu0 %v2182
        %2742 = vmatprep.subr.bf16.mxu0 0
        %2743 = vmatpush2.bf16.msra.mxu0 %v2175
        %2744 = vmatprep.subr.bf16.mxu0 0
        %2745 = vmatpush2.bf16.msra.mxu0 %v2168
        %2746 = vmatprep.subr.bf16.mxu0 0
        %2747 = vmatpush2.bf16.msra.mxu0 %v2161
        %2748 = vmatprep.subr.bf16.mxu0 0
        %2749 = vmatpush2.bf16.msra.mxu0 %v2154
        %2750 = vmatprep.subr.bf16.mxu0 0
        %2751 = vmatpush2.bf16.msra.mxu0 %v2147
        %2752 = vmatprep.mubr.bf16.mxu0 %v975
        %2753 = vmatmul.mubr.bf16.gmra.mxu0 %v974
        %v2754 = vpop.f32.mrf.mxu0
        %v2755 = vadd.f32 %v2714, %v2754
        %v2756 = vpop.f32.mrf.mxu0
        %v2757 = vpop.f32.mrf.mxu0
        %v2758 = vadd.f32 %v2717, %v2757
        %v2759 = vpop.f32.mrf.mxu0
        %2760 = vdwg.mxu0
        %v2761 = vmul.f32 %v2499, 0.5
        %v2762 = vmul.f32 %v2501, 0.5
        %v2763 = vmul.f32 %v2585, 0.5
        %v2764 = vmul.f32 %v2587, 0.5
        %v2765 = vmul.f32 %v2671, 0.5
        %v2766 = vmul.f32 %v2673, 0.5
        %v2767 = vmul.f32 %v2755, 0.5
        %v2768 = vmul.f32 %v2503, 0.5
        %v2769 = vmul.f32 %v2505, 0.5
        %v2770 = vmul.f32 %v2589, 0.5
        %v2771 = vmul.f32 %v2591, 0.5
        %v2772 = vmul.f32 %v2675, 0.5
        %v2773 = vmul.f32 %v2677, 0.5
        %v2774 = vmul.f32 %v2758, 0.5
        %v2775 = vtanh.pop %v2761
        %v2776 = vtanh.pop %v2762
        %v2777 = vtanh.pop %v2763
        %v2778 = vtanh.pop %v2764
        %v2779 = vtanh.pop %v2765
        %v2780 = vtanh.pop %v2766
        %v2781 = vtanh.pop %v2767
        %v2782 = vtanh.pop %v2768
        %v2783 = vtanh.pop %v2769
        %v2784 = vtanh.pop %v2770
        %v2785 = vtanh.pop %v2771
        %v2786 = vtanh.pop %v2772
        %v2787 = vtanh.pop %v2773
        %v2788 = vtanh.pop %v2774
        %v2789 = vmul.f32 %v2775, 0.5
        %v2790 = vmul.f32 %v2776, 0.5
        %v2791 = vmul.f32 %v2777, 0.5
        %v2792 = vmul.f32 %v2778, 0.5
        %v2793 = vmul.f32 %v2779, 0.5
        %v2794 = vmul.f32 %v2780, 0.5
        %v2795 = vmul.f32 %v2781, 0.5
        %v2796 = vmul.f32 %v2782, 0.5
        %v2797 = vmul.f32 %v2783, 0.5
        %v2798 = vmul.f32 %v2784, 0.5
        %v2799 = vmul.f32 %v2785, 0.5
        %v2800 = vmul.f32 %v2786, 0.5
        %v2801 = vmul.f32 %v2787, 0.5
        %v2802 = vmul.f32 %v2788, 0.5
        %v2803 = vadd.f32 %v2789, 0.5
        %v2804 = vadd.f32 %v2790, 0.5
        %v2805 = vadd.f32 %v2791, 0.5
        %v2806 = vadd.f32 %v2792, 0.5
        %v2807 = vadd.f32 %v2793, 0.5
        %v2808 = vadd.f32 %v2794, 0.5
        %v2809 = vadd.f32 %v2795, 0.5
        %v2810 = vadd.f32 %v2796, 0.5
        %v2811 = vadd.f32 %v2797, 0.5
        %v2812 = vadd.f32 %v2798, 0.5
        %v2813 = vadd.f32 %v2799, 0.5
        %v2814 = vadd.f32 %v2800, 0.5
        %v2815 = vadd.f32 %v2801, 0.5
        %v2816 = vadd.f32 %v2802, 0.5
        %v2817 = vpack.c.bf16 %v2810, %v2803
        %v2818 = vpack.c.bf16 %v2811, %v2804
        %v2819 = vpack.c.bf16 %v2812, %v2805
        %v2820 = vpack.c.bf16 %v2813, %v2806
        %v2821 = vpack.c.bf16 %v2814, %v2807
        %v2822 = vpack.c.bf16 %v2815, %v2808
        %v2823 = vpack.c.bf16 %v2816, %v2809
        %v2831 = vunpack.c.l.b16 %v2817
        %v2832 = vunpack.c.l.b16 %v2818
        %v2833 = vunpack.c.l.b16 %v2819
        %v2834 = vunpack.c.l.b16 %v2820
        %v2835 = vunpack.c.l.b16 %v2821
        %v2836 = vunpack.c.l.b16 %v2822
        %v2837 = vunpack.c.l.b16 %v2823
        %v2838 = vunpack.c.h.b16 %v2817
        %v2839 = vunpack.c.h.b16 %v2818
        %v2840 = vunpack.c.h.b16 %v2819
        %v2841 = vunpack.c.h.b16 %v2820
        %v2842 = vunpack.c.h.b16 %v2821
        %v2843 = vunpack.c.h.b16 %v2822
        %v2844 = vunpack.c.h.b16 %v2823
        %v2845 = vpack.c.b16 %v2832, %v2831
        %v2846 = vpack.c.b16 %v2834, %v2833
        %v2847 = vpack.c.b16 %v2836, %v2835
        %v2848 = vpack.c.b16 %v2837, %v2837
        %v2849 = vpack.c.b16 %v2839, %v2838
        %v2850 = vpack.c.b16 %v2841, %v2840
        %v2851 = vpack.c.b16 %v2843, %v2842
        %v2852 = vpack.c.b16 %v2844, %v2844
        %2861 = vst [vmem:[%s352] sm:$0xff] %v2845
        %2862 = vst [vmem:[%s352 + $0x8] sm:$0xff] %v2846
        %2863 = vst [vmem:[%s352 + $0x10] sm:$0xff] %v2847
        %2864 = vst [vmem:[%s352 + $0x18] sm:$0xf] %v2848
        %2865 = vst [vmem:[%s352 + $0x1c] sm:$0xff] %v2849
        %2866 = vst [vmem:[%s352 + $0x24] sm:$0xff] %v2850
        %2867 = vst [vmem:[%s352 + $0x2c] sm:$0xff] %v2851
        %2868 = vst [vmem:[%s352 + $0x34] sm:$0xf] %v2852
        %s2869 = sand.u32 %s186, 1
        %s2870 = scalar_lea.sflag [#allocation4], %s2869
        %s2871 = sand.u32 %s186, 1
        %s2872 = smul.addr %s2871, 56
        %s2873 = scalar_lea.vmem [#allocation11], %s2872
        // Predicated region
        $region69: #{tpu_custom_call.1} parent=47 // pred_check
          %p2874 = pneg %p196
        $region70: #{tpu_custom_call.1} parent=47 // pred_check_branch
          %2876 = sbr.rel (%p2874) target = $region72
        $region71: #{tpu_custom_call.1} parent=47 // pred_region
          %s2877 = smul.u32 2, %s26
          %s2879 = ssub.s32 896, 896
          %2880 = vsyncadd %s2870, %s2879
          %s2881 = smul.addr %s2877, 7
          %s2882 = smul.addr %s2881, 64
          %s2883 = scalar_lea.hbm %s7, %s2882
          %s2884 = sshll.u32 %s2873, 4
          %s2885 = int_to_ptr.vmem [resolvable:$true] %s2884
          %2890 = dma.vmem_to_hbm [thread:$0]  %s2885, 896, %s2883, %s2870, 448, 448, 28
        $region72: #{tpu_custom_call.1} parent=47 // pred_fallthru
          _
      $region48: #{tpu_custom_call.1} parent=5 // pred_fallthru
        _
      %p2891 = scmp.le.s32.totalorder 2, %s21
      // Predicated region
      $region73: #{tpu_custom_call.1} parent=5 // pred_check
        %p2892 = pneg %p2891
      $region74: #{tpu_custom_call.1} parent=5 // pred_check_branch
        %2894 = sbr.rel (%p2892) target = $region76
      $region75: #{tpu_custom_call.1} parent=5 // pred_region
        %s2895 = ssub.s32 %s21, 2
        // Predicated region
        $region77: #{tpu_custom_call.1} parent=75 // pred_check
          %p2896 = pneg %p202
        $region78: #{tpu_custom_call.1} parent=75 // pred_check_branch
          %2898 = sbr.rel (%p2896) target = $region80
        $region79: #{tpu_custom_call.1} parent=75 // pred_region
          %s2899 = sand.u32 %s187, 1
          %s2900 = scalar_lea.sflag [#allocation4], %s2899
          %s2901 = sand.u32 %s187, 1
          %s2902 = smul.addr %s2901, 56
          %s2903 = scalar_lea.vmem [#allocation11], %s2902
          %2904 = dma.done %s2900, 896
        $region80: #{tpu_custom_call.1} parent=75 // pred_fallthru
          _
      $region76: #{tpu_custom_call.1} parent=5 // pred_fallthru
        _
    $region6: #{tpu_custom_call.1} parent=1 // loop_footer
      %s25 = sadd.s32 1, %s21
    $region7: #{tpu_custom_call.1} parent=1 // loop_footer_branch
      %20 = sbr.rel target = $region3
    $region8: #{tpu_custom_call.1} parent=1 // loop_exit
      _
    %2905 = vsyncpa [#allocation3], 1
    %s2906 = scalar_lea.sflag [#allocation3], 1
    %2907 = vsyncpa %s2906, 1
    %2908 = vsyncpa [#allocation6], 1
    %2909 = vsyncpa [#allocation9], 1
    %2910 = vsyncpa [#allocation4], 1
    %s2911 = scalar_lea.sflag [#allocation4], 1
    %2912 = vsyncpa %s2911, 1

</llo_original>
